<compile_context>
chip_gen: v7x
topology: tpu7x:2x2x1
jax: 0.10.0
libtpu: 0.0.40
codegen_flags: <defaults>
</compile_context>

<pallas_src>
import functools

import jax
import jax.numpy as jnp
import numpy as np
from jax.experimental import pallas as pl
from jax.experimental.pallas import tpu as pltpu


def _round_up(x, m):
    return (x + m - 1) // m * m


# ---------------------------------------------------------------------------
# Pallas kernels
# ---------------------------------------------------------------------------
def _matmul_bias_kernel(x_ref, w_ref, b_ref, o_ref, *, relu):
    """out = relu(x @ w + bias) -- conv hot path (BN scale folded into w)."""
    acc = jnp.dot(x_ref[...], w_ref[...], preferred_element_type=jnp.float32)
    acc = acc + b_ref[...]
    if relu:
        acc = jnp.maximum(acc, 0.0)
    o_ref[...] = acc.astype(o_ref.dtype)


def _mlp_kernel(x_ref, w1_ref, b1_ref, w2_ref, b2_ref, o_ref):
    """Fused classifier: relu(x @ w1 + b1) @ w2 + b2 (two 1x1 convs)."""
    h = jnp.dot(x_ref[...], w1_ref[...], preferred_element_type=jnp.float32)
    h = jnp.maximum(h + b1_ref[...], 0.0)
    # TODO(synk): Dropout(0.1) between the two 1x1 convs uses inference
    # semantics (identity); train-mode stochastic masking is not emitted.
    o = jnp.dot(h.astype(w2_ref.dtype), w2_ref[...],
                preferred_element_type=jnp.float32)
    o_ref[...] = (o + b2_ref[...]).astype(o_ref.dtype)


def _bilinear_kernel(ah_ref, awt_ref, x_ref, o_ref):
    """Fused separable bilinear (align_corners): out = Ah @ x @ Aw^T.

    Runs once per (batch, channel); input block (1,1,Hi,Wi) NCHW, output block
    (1,1,Ho,Wo) NCHW, both passes stay in VMEM.
    """
    x = x_ref[0, 0].astype(jnp.float32)                                 # (Hi, Wi)
    t = jnp.dot(x, awt_ref[...], preferred_element_type=jnp.float32)    # (Hi, Wo)
    o = jnp.dot(ah_ref[...], t, preferred_element_type=jnp.float32)     # (Ho, Wo)
    o_ref[0, 0] = o.astype(o_ref.dtype)


# ---------------------------------------------------------------------------
# Wrappers
# ---------------------------------------------------------------------------
def _choose_tm(M, row_bytes):
    """Row tile targeting ~4 MiB of (x + out) per tile; multiple of 8.

    Double-buffered worst case across the network stays < ~10 MiB, well under
    the 32 MiB default scoped-VMEM limit (safe on v7x's 64 MiB physical VMEM).
    """
    tm = (4 * 1024 * 1024) // max(int(row_bytes), 1)
    tm = max(512, min(tm, 8192))
    tm = _round_up(tm, 8)
    return min(tm, _round_up(M, 8))


def _fused_matmul_bias(xcol, wmat, bias, relu, out_dtype):
    """Row-tiled, software-pipelined (x @ w + b) [+ReLU] on the MXU."""
    M, K = xcol.shape
    Kw, Cout = wmat.shape
    assert K == Kw
    out_bytes = jnp.dtype(out_dtype).itemsize
    tm = _choose_tm(M, K * 2 + Cout * out_bytes)
    grid = pl.cdiv(M, tm)
    b2 = bias.reshape(1, Cout).astype(jnp.float32)
    cost = pl.CostEstimate(
        flops=2 * M * K * Cout,
        transcendentals=0,
        bytes_accessed=M * K * 2 + K * Cout * 2 + M * Cout * out_bytes + Cout * 4,
    )
    return pl.pallas_call(
        functools.partial(_matmul_bias_kernel, relu=relu),
        out_shape=jax.ShapeDtypeStruct((M, Cout), out_dtype),
        grid=(grid,),
        in_specs=[
            pl.BlockSpec((tm, K), lambda i: (i, 0)),
            pl.BlockSpec((K, Cout), lambda i: (0, 0)),
            pl.BlockSpec((1, Cout), lambda i: (0, 0)),
        ],
        out_specs=pl.BlockSpec((tm, Cout), lambda i: (i, 0)),
        compiler_params=pltpu.CompilerParams(dimension_semantics=("parallel",)),
        cost_estimate=cost,
    )(xcol, wmat, b2)


def conv2d(x_nhwc, wmat, bias, *, ksize, stride, padding, relu,
           out_dtype=jnp.bfloat16):
    """Conv2d (+folded BN affine, +optional ReLU) as im2col + fused matmul.

    `wmat` is (KH*KW*Cin, Cout) bf16 with BN scale already folded in.
    """
    # TODO(synk): im2col still materializes one (M, K) bf16 buffer in HBM (a
    # single fused gather under jit); fully in-kernel tap accumulation with
    # shifted halo blocks is not expressible with aligned BlockSpecs at the
    # small/stride-2 spatial sizes used here, so traffic is instead bounded by
    # bf16 operands and large row tiles.
    N, H, W, Cin_x = x_nhwc.shape
    K, Cout = wmat.shape
    KH = KW = ksize
    Cin = K // (KH * KW)
    assert Cin <= Cin_x
    Ho = (H + 2 * padding - KH) // stride + 1
    Wo = (W + 2 * padding - KW) // stride + 1
    xp = x_nhwc[..., :Cin]
    if padding:
        xp = jnp.pad(xp, ((0, 0), (padding, padding),
                          (padding, padding), (0, 0)))
    patches = [
        xp[:, kh:kh + stride * Ho:stride, kw:kw + stride * Wo:stride, :]
        for kh in range(KH) for kw in range(KW)
    ]
    xcol = jnp.concatenate(patches, axis=-1).reshape(N * Ho * Wo, K)
    out = _fused_matmul_bias(xcol.astype(jnp.bfloat16), wmat, bias, relu,
                             out_dtype)
    return out.reshape(N, Ho, Wo, Cout)


def classifier_fused(x_nhwc, w1, b1, w2, b2, out_dtype=jnp.bfloat16):
    """Fused (1x1 conv + ReLU + dropout(id) + 1x1 conv) in a single kernel."""
    N, H, W, C = x_nhwc.shape
    M = N * H * W
    C1 = w1.shape[1]
    C2 = w2.shape[1]
    xf = x_nhwc.reshape(M, C).astype(jnp.bfloat16)
    out_bytes = jnp.dtype(out_dtype).itemsize
    tm = _choose_tm(M, C * 2 + C1 * 2 + C2 * out_bytes)
    grid = pl.cdiv(M, tm)
    cost = pl.CostEstimate(
        flops=2 * M * C * C1 + 2 * M * C1 * C2,
        transcendentals=0,
        bytes_accessed=(M * C * 2 + C * C1 * 2 + C1 * C2 * 2
                        + M * C2 * out_bytes + (C1 + C2) * 4),
    )
    out = pl.pallas_call(
        _mlp_kernel,
        out_shape=jax.ShapeDtypeStruct((M, C2), out_dtype),
        grid=(grid,),
        in_specs=[
            pl.BlockSpec((tm, C), lambda i: (i, 0)),
            pl.BlockSpec((C, C1), lambda i: (0, 0)),
            pl.BlockSpec((1, C1), lambda i: (0, 0)),
            pl.BlockSpec((C1, C2), lambda i: (0, 0)),
            pl.BlockSpec((1, C2), lambda i: (0, 0)),
        ],
        out_specs=pl.BlockSpec((tm, C2), lambda i: (i, 0)),
        compiler_params=pltpu.CompilerParams(dimension_semantics=("parallel",)),
        cost_estimate=cost,
    )(xf, w1, b1.reshape(1, C1).astype(jnp.float32),
      w2, b2.reshape(1, C2).astype(jnp.float32))
    return out.reshape(N, H, W, C2)


def _align_corners_matrix(out_size, in_size):
    m = np.zeros((out_size, in_size), dtype=np.float32)
    if in_size == 1:
        m[:, 0] = 1.0
        return m
    for o in range(out_size):
        src = o * (in_size - 1) / (out_size - 1) if out_size > 1 else 0.0
        f = min(int(np.floor(src)), in_size - 2)
        frac = src - f
        m[o, f] += 1.0 - frac
        m[o, f + 1] += frac
    return m


def bilinear_upsample_align_corners_nchw(x_nchw, out_hw):
    """F.interpolate(bilinear, align_corners=True); NCHW in, NCHW out.

    One fused kernel per (batch, channel): both separable passes in VMEM, no
    intermediate HBM tensor and no full-resolution transpose.
    """
    N, C, Hi, Wi = x_nchw.shape
    Ho, Wo = out_hw
    ah = jnp.asarray(_align_corners_matrix(Ho, Hi))        # (Ho, Hi)
    awt = jnp.asarray(_align_corners_matrix(Wo, Wi).T)     # (Wi, Wo)
    in_bytes = jnp.dtype(x_nchw.dtype).itemsize
    cost = pl.CostEstimate(
        flops=2 * N * C * (Hi * Wi * Wo + Hi * Wo * Ho),
        transcendentals=0,
        bytes_accessed=(N * C * Hi * Wi * in_bytes + N * C * Ho * Wo * 4
                        + (Ho * Hi + Wi * Wo) * 4),
    )
    return pl.pallas_call(
        _bilinear_kernel,
        out_shape=jax.ShapeDtypeStruct((N, C, Ho, Wo), jnp.float32),
        grid=(N, C),
        in_specs=[
            pl.BlockSpec((Ho, Hi), lambda n, c: (0, 0)),
            pl.BlockSpec((Wi, Wo), lambda n, c: (0, 0)),
            pl.BlockSpec((1, 1, Hi, Wi), lambda n, c: (n, c, 0, 0)),
        ],
        out_specs=pl.BlockSpec((1, 1, Ho, Wo), lambda n, c: (n, c, 0, 0)),
        compiler_params=pltpu.CompilerParams(
            dimension_semantics=("parallel", "parallel")),
        cost_estimate=cost,
    )(ah, awt, x_nchw)


# ---------------------------------------------------------------------------
# FastSCNN parameters + forward
# ---------------------------------------------------------------------------
def init_params(key, n_classes):
    ks = jax.random.split(key, 14)

    def conv_w(k, cout, cin, kh, kw):
        return 0.1 * jax.random.normal(k, (cout, cin, kh, kw), jnp.float32)

    def bn(k, c):
        k1, k2, k3, k4 = jax.random.split(k, 4)
        gamma = 1.0 + 0.1 * jax.random.normal(k1, (c,), jnp.float32)
        beta = 0.1 * jax.random.normal(k2, (c,), jnp.float32)
        mean = 0.1 * jax.random.normal(k3, (c,), jnp.float32)
        var = jax.random.uniform(k4, (c,), jnp.float32, minval=0.5, maxval=1.5)
        return gamma, beta, mean, var

    return {
        "conv1_w": conv_w(ks[0], 32, 3, 3, 3),
        "bn1": bn(ks[1], 32),
        "conv2_w": conv_w(ks[2], 48, 32, 3, 3),
        "bn2": bn(ks[3], 48),
        "conv3_w": conv_w(ks[4], 128, 48, 3, 3),
        "conv3_b": 0.1 * jax.random.normal(ks[5], (128,), jnp.float32),
        "bn3": bn(ks[6], 128),
        "conv4_w": conv_w(ks[7], 128, 128, 3, 3),
        "conv4_b": 0.1 * jax.random.normal(ks[8], (128,), jnp.float32),
        "bn4": bn(ks[9], 128),
        "cls1_w": conv_w(ks[10], 128, 128, 1, 1),
        "cls1_b": 0.1 * jax.random.normal(ks[11], (128,), jnp.float32),
        "cls2_w": conv_w(ks[12], n_classes, 128, 1, 1),
        "cls2_b": 0.1 * jax.random.normal(ks[13], (n_classes,), jnp.float32),
    }


def _fold_bn(conv_bias, bn_params, eps=1e-5):
    gamma, beta, mean, var = bn_params
    scale = gamma / jnp.sqrt(var + eps)
    bias = (conv_bias - mean) * scale + beta
    return scale, bias


def _pack_conv(w_oihw, scale, bias):
    """Fold per-channel scale into the weight and emit a kernel-ready
    bf16 (KH*KW*Cin, Cout) matrix + f32 (Cout,) bias (no channel padding)."""
    cout, cin, kh, kw = w_oihw.shape
    w = w_oihw * scale[:, None, None, None]
    wmat = jnp.transpose(w, (2, 3, 1, 0)).reshape(kh * kw * cin, cout)
    return wmat.astype(jnp.bfloat16), bias.astype(jnp.float32)


def prepare_params(params, n_classes):
    """One-time parameter preparation (BN fold, transpose, bf16 cast)."""
    s, b = _fold_bn(jnp.zeros((32,), jnp.float32), params["bn1"])
    w1, b1 = _pack_conv(params["conv1_w"], s, b)
    s, b = _fold_bn(jnp.zeros((48,), jnp.float32), params["bn2"])
    w2, b2 = _pack_conv(params["conv2_w"], s, b)
    s, b = _fold_bn(params["conv3_b"], params["bn3"])
    w3, b3 = _pack_conv(params["conv3_w"], s, b)
    s, b = _fold_bn(params["conv4_b"], params["bn4"])
    w4, b4 = _pack_conv(params["conv4_w"], s, b)
    wc1, bc1 = _pack_conv(params["cls1_w"], jnp.ones((128,), jnp.float32),
                          params["cls1_b"])
    wc2, bc2 = _pack_conv(params["cls2_w"],
                          jnp.ones((n_classes,), jnp.float32),
                          params["cls2_b"])
    return {"w1": w1, "b1": b1, "w2": w2, "b2": b2, "w3": w3, "b3": b3,
            "w4": w4, "b4": b4, "wc1": wc1, "bc1": bc1, "wc2": wc2, "bc2": bc2}


@jax.jit
def fast_scnn_forward(prepped, x_nchw):
    """FastSCNN forward (inference semantics). Input NCHW, output NCHW."""
    N, C, H, W = x_nchw.shape
    x = jnp.transpose(x_nchw, (0, 2, 3, 1)).astype(jnp.bfloat16)  # -> NHWC

    # learning_to_downsample
    x = conv2d(x, prepped["w1"], prepped["b1"],
               ksize=3, stride=2, padding=1, relu=True)
    x = conv2d(x, prepped["w2"], prepped["b2"],
               ksize=3, stride=2, padding=1, relu=True)

    # global_feature_extractor
    x = conv2d(x, prepped["w3"], prepped["b3"],
               ksize=3, stride=2, padding=1, relu=True)
    x = conv2d(x, prepped["w4"], prepped["b4"],
               ksize=3, stride=1, padding=1, relu=True)

    # classifier: 1x1 conv + ReLU + dropout(identity) + 1x1 conv, fused
    x = classifier_fused(x, prepped["wc1"], prepped["bc1"],
                         prepped["wc2"], prepped["bc2"],
                         out_dtype=jnp.bfloat16)

    # low-resolution NHWC -> NCHW (cheap; upsample then emits NCHW directly)
    x = jnp.transpose(x, (0, 3, 1, 2))

    # F.interpolate(size=(H, W), mode='bilinear', align_corners=True)
    return bilinear_upsample_align_corners_nchw(x, (H, W))


if __name__ == "__main__":
    key = jax.random.PRNGKey(0)
    pkey, xkey = jax.random.split(key)
    n_classes = 6
    params = init_params(pkey, n_classes)
    prepped = prepare_params(params, n_classes)
    x = jax.random.normal(xkey, (2, 3, 16, 16), jnp.float32)  # NCHW

    out = fast_scnn_forward(prepped, x)
    out = jax.block_until_ready(out)

    assert out.shape == (2, n_classes, 16, 16), out.shape
    assert bool(jnp.all(jnp.isfinite(out)))
    print("KERNEL_OK")
</pallas_src>

<mosaic_0001>
module attributes {stable_mosaic.version = 11 : i64} {
  func.func @_matmul_bias_kernel(%arg0: i32, %arg1: memref<128x27xbf16, #tpu.memory_space<vmem>>, %arg2: memref<27x32xbf16, #tpu.memory_space<vmem>>, %arg3: memref<1x32xf32, #tpu.memory_space<vmem>>, %arg4: memref<128x32xbf16, #tpu.memory_space<vmem>>) attributes {dimension_semantics = [#tpu.dimension_semantics<parallel>], iteration_bounds = array<i64: 1>, scalar_prefetch = 0 : i64, scratch_operands = 0 : i64, tpu.core_type = #tpu.core_type<tc>, window_params = [{transform_indices = @transform_0, window_bounds = array<i64: 128, 27>}, {pipeline_mode = #tpu.pipeline_mode<synchronous>, transform_indices = @transform_1, window_bounds = array<i64: 27, 32>}, {pipeline_mode = #tpu.pipeline_mode<synchronous>, transform_indices = @transform_2, window_bounds = array<i64: 1, 32>}, {transform_indices = @transform_3, window_bounds = array<i64: 128, 32>}]} {
    %c0 = arith.constant 0 : index
    %c0_0 = arith.constant 0 : index
    %0 = vector.load %arg1[%c0, %c0_0] : memref<128x27xbf16, #tpu.memory_space<vmem>>, vector<128x27xbf16>
    %c0_1 = arith.constant 0 : index
    %c0_2 = arith.constant 0 : index
    %1 = vector.load %arg2[%c0_1, %c0_2] : memref<27x32xbf16, #tpu.memory_space<vmem>>, vector<27x32xbf16>
    %cst = arith.constant dense<0.000000e+00> : vector<128x32xf32>
    %2 = tpu.matmul %0, %1, %cst {dimension_numbers = #tpu.dot_dimension_numbers<[1], [0], [0], [1], [0, 0, 1, 1], [], []>} : vector<128x27xbf16>, vector<27x32xbf16>, vector<128x32xf32> -> vector<128x32xf32>
    %c0_3 = arith.constant 0 : index
    %c0_4 = arith.constant 0 : index
    %3 = vector.load %arg3[%c0_3, %c0_4] : memref<1x32xf32, #tpu.memory_space<vmem>>, vector<1x32xf32>
    %4 = vector.broadcast %3 : vector<1x32xf32> to vector<128x32xf32>
    %5 = arith.addf %2, %4 : vector<128x32xf32>
    %cst_5 = arith.constant 0.000000e+00 : f32
    %6 = vector.broadcast %cst_5 : f32 to vector<128x32xf32>
    %7 = arith.maximumf %5, %6 : vector<128x32xf32>
    %8 = arith.truncf %7 : vector<128x32xf32> to vector<128x32xbf16>
    %c0_6 = arith.constant 0 : index
    %c0_7 = arith.constant 0 : index
    %9 = vector.load %arg4[%c0_6, %c0_7] : memref<128x32xbf16, #tpu.memory_space<vmem>>, vector<128x32xbf16>
    tpu.vector_store %arg4[%c0_6, %c0_7], %8 {strides = array<i32>} : memref<128x32xbf16, #tpu.memory_space<vmem>>, vector<128x32xbf16>,
    return
  }
  func.func @transform_0(%arg0: i32) -> (i32, i32) {
    %c0_i32 = arith.constant 0 : i32
    %c0_i32_0 = arith.constant 0 : i32
    return %arg0, %c0_i32 : i32, i32
  }
  func.func @transform_1(%arg0: i32) -> (i32, i32) {
    %c0_i32 = arith.constant 0 : i32
    %c0_i32_0 = arith.constant 0 : i32
    %c0_i32_1 = arith.constant 0 : i32
    return %c0_i32, %c0_i32_0 : i32, i32
  }
  func.func @transform_2(%arg0: i32) -> (i32, i32) {
    %c0_i32 = arith.constant 0 : i32
    %c0_i32_0 = arith.constant 0 : i32
    %c0_i32_1 = arith.constant 0 : i32
    return %c0_i32, %c0_i32_0 : i32, i32
  }
  func.func @transform_3(%arg0: i32) -> (i32, i32) {
    %c0_i32 = arith.constant 0 : i32
    %c0_i32_0 = arith.constant 0 : i32
    return %arg0, %c0_i32 : i32, i32
  }
}

module attributes {stable_mosaic.version = 11 : i64} {
  func.func @_matmul_bias_kernel(%arg0: i32, %arg1: memref<32x288xbf16, #tpu.memory_space<vmem>>, %arg2: memref<288x48xbf16, #tpu.memory_space<vmem>>, %arg3: memref<1x48xf32, #tpu.memory_space<vmem>>, %arg4: memref<32x48xbf16, #tpu.memory_space<vmem>>) attributes {dimension_semantics = [#tpu.dimension_semantics<parallel>], iteration_bounds = array<i64: 1>, scalar_prefetch = 0 : i64, scratch_operands = 0 : i64, tpu.core_type = #tpu.core_type<tc>, window_params = [{transform_indices = @transform_0, window_bounds = array<i64: 32, 288>}, {pipeline_mode = #tpu.pipeline_mode<synchronous>, transform_indices = @transform_1, window_bounds = array<i64: 288, 48>}, {pipeline_mode = #tpu.pipeline_mode<synchronous>, transform_indices = @transform_2, window_bounds = array<i64: 1, 48>}, {transform_indices = @transform_3, window_bounds = array<i64: 32, 48>}]} {
    %c0 = arith.constant 0 : index
    %c0_0 = arith.constant 0 : index
    %0 = vector.load %arg1[%c0, %c0_0] : memref<32x288xbf16, #tpu.memory_space<vmem>>, vector<32x288xbf16>
    %c0_1 = arith.constant 0 : index
    %c0_2 = arith.constant 0 : index
    %1 = vector.load %arg2[%c0_1, %c0_2] : memref<288x48xbf16, #tpu.memory_space<vmem>>, vector<288x48xbf16>
    %cst = arith.constant dense<0.000000e+00> : vector<32x48xf32>
    %2 = tpu.matmul %0, %1, %cst {dimension_numbers = #tpu.dot_dimension_numbers<[1], [0], [0], [1], [0, 0, 1, 1], [], []>} : vector<32x288xbf16>, vector<288x48xbf16>, vector<32x48xf32> -> vector<32x48xf32>
    %c0_3 = arith.constant 0 : index
    %c0_4 = arith.constant 0 : index
    %3 = vector.load %arg3[%c0_3, %c0_4] : memref<1x48xf32, #tpu.memory_space<vmem>>, vector<1x48xf32>
    %4 = vector.broadcast %3 : vector<1x48xf32> to vector<32x48xf32>
    %5 = arith.addf %2, %4 : vector<32x48xf32>
    %cst_5 = arith.constant 0.000000e+00 : f32
    %6 = vector.broadcast %cst_5 : f32 to vector<32x48xf32>
    %7 = arith.maximumf %5, %6 : vector<32x48xf32>
    %8 = arith.truncf %7 : vector<32x48xf32> to vector<32x48xbf16>
    %c0_6 = arith.constant 0 : index
    %c0_7 = arith.constant 0 : index
    %9 = vector.load %arg4[%c0_6, %c0_7] : memref<32x48xbf16, #tpu.memory_space<vmem>>, vector<32x48xbf16>
    tpu.vector_store %arg4[%c0_6, %c0_7], %8 {strides = array<i32>} : memref<32x48xbf16, #tpu.memory_space<vmem>>, vector<32x48xbf16>,
    return
  }
  func.func @transform_0(%arg0: i32) -> (i32, i32) {
    %c0_i32 = arith.constant 0 : i32
    %c0_i32_0 = arith.constant 0 : i32
    return %arg0, %c0_i32 : i32, i32
  }
  func.func @transform_1(%arg0: i32) -> (i32, i32) {
    %c0_i32 = arith.constant 0 : i32
    %c0_i32_0 = arith.constant 0 : i32
    %c0_i32_1 = arith.constant 0 : i32
    return %c0_i32, %c0_i32_0 : i32, i32
  }
  func.func @transform_2(%arg0: i32) -> (i32, i32) {
    %c0_i32 = arith.constant 0 : i32
    %c0_i32_0 = arith.constant 0 : i32
    %c0_i32_1 = arith.constant 0 : i32
    return %c0_i32, %c0_i32_0 : i32, i32
  }
  func.func @transform_3(%arg0: i32) -> (i32, i32) {
    %c0_i32 = arith.constant 0 : i32
    %c0_i32_0 = arith.constant 0 : i32
    return %arg0, %c0_i32 : i32, i32
  }
}

module attributes {stable_mosaic.version = 11 : i64} {
  func.func @_matmul_bias_kernel(%arg0: i32, %arg1: memref<8x432xbf16, #tpu.memory_space<vmem>>, %arg2: memref<432x128xbf16, #tpu.memory_space<vmem>>, %arg3: memref<1x128xf32, #tpu.memory_space<vmem>>, %arg4: memref<8x128xbf16, #tpu.memory_space<vmem>>) attributes {dimension_semantics = [#tpu.dimension_semantics<parallel>], iteration_bounds = array<i64: 1>, scalar_prefetch = 0 : i64, scratch_operands = 0 : i64, tpu.core_type = #tpu.core_type<tc>, window_params = [{transform_indices = @transform_0, window_bounds = array<i64: 8, 432>}, {pipeline_mode = #tpu.pipeline_mode<synchronous>, transform_indices = @transform_1, window_bounds = array<i64: 432, 128>}, {pipeline_mode = #tpu.pipeline_mode<synchronous>, transform_indices = @transform_2, window_bounds = array<i64: 1, 128>}, {transform_indices = @transform_3, window_bounds = array<i64: 8, 128>}]} {
    %c0 = arith.constant 0 : index
    %c0_0 = arith.constant 0 : index
    %0 = vector.load %arg1[%c0, %c0_0] : memref<8x432xbf16, #tpu.memory_space<vmem>>, vector<8x432xbf16>
    %c0_1 = arith.constant 0 : index
    %c0_2 = arith.constant 0 : index
    %1 = vector.load %arg2[%c0_1, %c0_2] : memref<432x128xbf16, #tpu.memory_space<vmem>>, vector<432x128xbf16>
    %cst = arith.constant dense<0.000000e+00> : vector<8x128xf32>
    %2 = tpu.matmul %0, %1, %cst {dimension_numbers = #tpu.dot_dimension_numbers<[1], [0], [0], [1], [0, 0, 1, 1], [], []>} : vector<8x432xbf16>, vector<432x128xbf16>, vector<8x128xf32> -> vector<8x128xf32>
    %c0_3 = arith.constant 0 : index
    %c0_4 = arith.constant 0 : index
    %3 = vector.load %arg3[%c0_3, %c0_4] : memref<1x128xf32, #tpu.memory_space<vmem>>, vector<1x128xf32>
    %4 = vector.broadcast %3 : vector<1x128xf32> to vector<8x128xf32>
    %5 = arith.addf %2, %4 : vector<8x128xf32>
    %cst_5 = arith.constant 0.000000e+00 : f32
    %6 = vector.broadcast %cst_5 : f32 to vector<8x128xf32>
    %7 = arith.maximumf %5, %6 : vector<8x128xf32>
    %8 = arith.truncf %7 : vector<8x128xf32> to vector<8x128xbf16>
    %c0_6 = arith.constant 0 : index
    %c0_7 = arith.constant 0 : index
    %9 = vector.load %arg4[%c0_6, %c0_7] : memref<8x128xbf16, #tpu.memory_space<vmem>>, vector<8x128xbf16>
    tpu.vector_store %arg4[%c0_6, %c0_7], %8 {strides = array<i32>} : memref<8x128xbf16, #tpu.memory_space<vmem>>, vector<8x128xbf16>,
    return
  }
  func.func @transform_0(%arg0: i32) -> (i32, i32) {
    %c0_i32 = arith.constant 0 : i32
    %c0_i32_0 = arith.constant 0 : i32
    return %arg0, %c0_i32 : i32, i32
  }
  func.func @transform_1(%arg0: i32) -> (i32, i32) {
    %c0_i32 = arith.constant 0 : i32
    %c0_i32_0 = arith.constant 0 : i32
    %c0_i32_1 = arith.constant 0 : i32
    return %c0_i32, %c0_i32_0 : i32, i32
  }
  func.func @transform_2(%arg0: i32) -> (i32, i32) {
    %c0_i32 = arith.constant 0 : i32
    %c0_i32_0 = arith.constant 0 : i32
    %c0_i32_1 = arith.constant 0 : i32
    return %c0_i32, %c0_i32_0 : i32, i32
  }
  func.func @transform_3(%arg0: i32) -> (i32, i32) {
    %c0_i32 = arith.constant 0 : i32
    %c0_i32_0 = arith.constant 0 : i32
    return %arg0, %c0_i32 : i32, i32
  }
}

module attributes {stable_mosaic.version = 11 : i64} {
  func.func @_mlp_kernel(%arg0: i32, %arg1: memref<8x128xbf16, #tpu.memory_space<vmem>>, %arg2: memref<128x128xbf16, #tpu.memory_space<vmem>>, %arg3: memref<1x128xf32, #tpu.memory_space<vmem>>, %arg4: memref<128x6xbf16, #tpu.memory_space<vmem>>, %arg5: memref<1x6xf32, #tpu.memory_space<vmem>>, %arg6: memref<8x6xbf16, #tpu.memory_space<vmem>>) attributes {dimension_semantics = [#tpu.dimension_semantics<parallel>], iteration_bounds = array<i64: 1>, scalar_prefetch = 0 : i64, scratch_operands = 0 : i64, tpu.core_type = #tpu.core_type<tc>, window_params = [{transform_indices = @transform_0, window_bounds = array<i64: 8, 128>}, {pipeline_mode = #tpu.pipeline_mode<synchronous>, transform_indices = @transform_1, window_bounds = array<i64: 128, 128>}, {pipeline_mode = #tpu.pipeline_mode<synchronous>, transform_indices = @transform_2, window_bounds = array<i64: 1, 128>}, {pipeline_mode = #tpu.pipeline_mode<synchronous>, transform_indices = @transform_3, window_bounds = array<i64: 128, 6>}, {pipeline_mode = #tpu.pipeline_mode<synchronous>, transform_indices = @transform_4, window_bounds = array<i64: 1, 6>}, {transform_indices = @transform_5, window_bounds = array<i64: 8, 6>}]} {
    %c0 = arith.constant 0 : index
    %c0_0 = arith.constant 0 : index
    %0 = vector.load %arg1[%c0, %c0_0] : memref<8x128xbf16, #tpu.memory_space<vmem>>, vector<8x128xbf16>
    %c0_1 = arith.constant 0 : index
    %c0_2 = arith.constant 0 : index
    %1 = vector.load %arg2[%c0_1, %c0_2] : memref<128x128xbf16, #tpu.memory_space<vmem>>, vector<128x128xbf16>
    %cst = arith.constant dense<0.000000e+00> : vector<8x128xf32>
    %2 = tpu.matmul %0, %1, %cst {dimension_numbers = #tpu.dot_dimension_numbers<[1], [0], [0], [1], [0, 0, 1, 1], [], []>} : vector<8x128xbf16>, vector<128x128xbf16>, vector<8x128xf32> -> vector<8x128xf32>
    %c0_3 = arith.constant 0 : index
    %c0_4 = arith.constant 0 : index
    %3 = vector.load %arg3[%c0_3, %c0_4] : memref<1x128xf32, #tpu.memory_space<vmem>>, vector<1x128xf32>
    %4 = vector.broadcast %3 : vector<1x128xf32> to vector<8x128xf32>
    %5 = arith.addf %2, %4 : vector<8x128xf32>
    %cst_5 = arith.constant 0.000000e+00 : f32
    %6 = vector.broadcast %cst_5 : f32 to vector<8x128xf32>
    %7 = arith.maximumf %5, %6 : vector<8x128xf32>
    %8 = arith.truncf %7 : vector<8x128xf32> to vector<8x128xbf16>
    %c0_6 = arith.constant 0 : index
    %c0_7 = arith.constant 0 : index
    %9 = vector.load %arg4[%c0_6, %c0_7] : memref<128x6xbf16, #tpu.memory_space<vmem>>, vector<128x6xbf16>
    %cst_8 = arith.constant dense<0.000000e+00> : vector<8x6xf32>
    %10 = tpu.matmul %8, %9, %cst_8 {dimension_numbers = #tpu.dot_dimension_numbers<[1], [0], [0], [1], [0, 0, 1, 1], [], []>} : vector<8x128xbf16>, vector<128x6xbf16>, vector<8x6xf32> -> vector<8x6xf32>
    %c0_9 = arith.constant 0 : index
    %c0_10 = arith.constant 0 : index
    %11 = vector.load %arg5[%c0_9, %c0_10] : memref<1x6xf32, #tpu.memory_space<vmem>>, vector<1x6xf32>
    %12 = vector.broadcast %11 : vector<1x6xf32> to vector<8x6xf32>
    %13 = arith.addf %10, %12 : vector<8x6xf32>
    %14 = arith.truncf %13 : vector<8x6xf32> to vector<8x6xbf16>
    %c0_11 = arith.constant 0 : index
    %c0_12 = arith.constant 0 : index
    %15 = vector.load %arg6[%c0_11, %c0_12] : memref<8x6xbf16, #tpu.memory_space<vmem>>, vector<8x6xbf16>
    tpu.vector_store %arg6[%c0_11, %c0_12], %14 {strides = array<i32>} : memref<8x6xbf16, #tpu.memory_space<vmem>>, vector<8x6xbf16>,
    return
  }
  func.func @transform_0(%arg0: i32) -> (i32, i32) {
    %c0_i32 = arith.constant 0 : i32
    %c0_i32_0 = arith.constant 0 : i32
    return %arg0, %c0_i32 : i32, i32
  }
  func.func @transform_1(%arg0: i32) -> (i32, i32) {
    %c0_i32 = arith.constant 0 : i32
    %c0_i32_0 = arith.constant 0 : i32
    %c0_i32_1 = arith.constant 0 : i32
    return %c0_i32, %c0_i32_0 : i32, i32
  }
  func.func @transform_2(%arg0: i32) -> (i32, i32) {
    %c0_i32 = arith.constant 0 : i32
    %c0_i32_0 = arith.constant 0 : i32
    %c0_i32_1 = arith.constant 0 : i32
    return %c0_i32, %c0_i32_0 : i32, i32
  }
  func.func @transform_3(%arg0: i32) -> (i32, i32) {
    %c0_i32 = arith.constant 0 : i32
    %c0_i32_0 = arith.constant 0 : i32
    %c0_i32_1 = arith.constant 0 : i32
    return %c0_i32, %c0_i32_0 : i32, i32
  }
  func.func @transform_4(%arg0: i32) -> (i32, i32) {
    %c0_i32 = arith.constant 0 : i32
    %c0_i32_0 = arith.constant 0 : i32
    %c0_i32_1 = arith.constant 0 : i32
    return %c0_i32, %c0_i32_0 : i32, i32
  }
  func.func @transform_5(%arg0: i32) -> (i32, i32) {
    %c0_i32 = arith.constant 0 : i32
    %c0_i32_0 = arith.constant 0 : i32
    return %arg0, %c0_i32 : i32, i32
  }
}

module attributes {stable_mosaic.version = 11 : i64} {
  func.func @_matmul_bias_kernel(%arg0: i32, %arg1: memref<8x1152xbf16, #tpu.memory_space<vmem>>, %arg2: memref<1152x128xbf16, #tpu.memory_space<vmem>>, %arg3: memref<1x128xf32, #tpu.memory_space<vmem>>, %arg4: memref<8x128xbf16, #tpu.memory_space<vmem>>) attributes {dimension_semantics = [#tpu.dimension_semantics<parallel>], iteration_bounds = array<i64: 1>, scalar_prefetch = 0 : i64, scratch_operands = 0 : i64, tpu.core_type = #tpu.core_type<tc>, window_params = [{transform_indices = @transform_0, window_bounds = array<i64: 8, 1152>}, {pipeline_mode = #tpu.pipeline_mode<synchronous>, transform_indices = @transform_1, window_bounds = array<i64: 1152, 128>}, {pipeline_mode = #tpu.pipeline_mode<synchronous>, transform_indices = @transform_2, window_bounds = array<i64: 1, 128>}, {transform_indices = @transform_3, window_bounds = array<i64: 8, 128>}]} {
    %c0 = arith.constant 0 : index
    %c0_0 = arith.constant 0 : index
    %0 = vector.load %arg1[%c0, %c0_0] : memref<8x1152xbf16, #tpu.memory_space<vmem>>, vector<8x1152xbf16>
    %c0_1 = arith.constant 0 : index
    %c0_2 = arith.constant 0 : index
    %1 = vector.load %arg2[%c0_1, %c0_2] : memref<1152x128xbf16, #tpu.memory_space<vmem>>, vector<1152x128xbf16>
    %cst = arith.constant dense<0.000000e+00> : vector<8x128xf32>
    %2 = tpu.matmul %0, %1, %cst {dimension_numbers = #tpu.dot_dimension_numbers<[1], [0], [0], [1], [0, 0, 1, 1], [], []>} : vector<8x1152xbf16>, vector<1152x128xbf16>, vector<8x128xf32> -> vector<8x128xf32>
    %c0_3 = arith.constant 0 : index
    %c0_4 = arith.constant 0 : index
    %3 = vector.load %arg3[%c0_3, %c0_4] : memref<1x128xf32, #tpu.memory_space<vmem>>, vector<1x128xf32>
    %4 = vector.broadcast %3 : vector<1x128xf32> to vector<8x128xf32>
    %5 = arith.addf %2, %4 : vector<8x128xf32>
    %cst_5 = arith.constant 0.000000e+00 : f32
    %6 = vector.broadcast %cst_5 : f32 to vector<8x128xf32>
    %7 = arith.maximumf %5, %6 : vector<8x128xf32>
    %8 = arith.truncf %7 : vector<8x128xf32> to vector<8x128xbf16>
    %c0_6 = arith.constant 0 : index
    %c0_7 = arith.constant 0 : index
    %9 = vector.load %arg4[%c0_6, %c0_7] : memref<8x128xbf16, #tpu.memory_space<vmem>>, vector<8x128xbf16>
    tpu.vector_store %arg4[%c0_6, %c0_7], %8 {strides = array<i32>} : memref<8x128xbf16, #tpu.memory_space<vmem>>, vector<8x128xbf16>,
    return
  }
  func.func @transform_0(%arg0: i32) -> (i32, i32) {
    %c0_i32 = arith.constant 0 : i32
    %c0_i32_0 = arith.constant 0 : i32
    return %arg0, %c0_i32 : i32, i32
  }
  func.func @transform_1(%arg0: i32) -> (i32, i32) {
    %c0_i32 = arith.constant 0 : i32
    %c0_i32_0 = arith.constant 0 : i32
    %c0_i32_1 = arith.constant 0 : i32
    return %c0_i32, %c0_i32_0 : i32, i32
  }
  func.func @transform_2(%arg0: i32) -> (i32, i32) {
    %c0_i32 = arith.constant 0 : i32
    %c0_i32_0 = arith.constant 0 : i32
    %c0_i32_1 = arith.constant 0 : i32
    return %c0_i32, %c0_i32_0 : i32, i32
  }
  func.func @transform_3(%arg0: i32) -> (i32, i32) {
    %c0_i32 = arith.constant 0 : i32
    %c0_i32_0 = arith.constant 0 : i32
    return %arg0, %c0_i32 : i32, i32
  }
}

module attributes {stable_mosaic.version = 11 : i64} {
  func.func @_bilinear_kernel(%arg0: i32, %arg1: i32, %arg2: memref<16x2xf32, #tpu.memory_space<vmem>>, %arg3: memref<2x16xf32, #tpu.memory_space<vmem>>, %arg4: memref<1x1x2x2xbf16, #tpu.memory_space<vmem>>, %arg5: memref<1x1x16x16xf32, #tpu.memory_space<vmem>>) attributes {dimension_semantics = [#tpu.dimension_semantics<parallel>, #tpu.dimension_semantics<parallel>], iteration_bounds = array<i64: 2, 6>, scalar_prefetch = 0 : i64, scratch_operands = 0 : i64, tpu.core_type = #tpu.core_type<tc>, window_params = [{pipeline_mode = #tpu.pipeline_mode<synchronous>, transform_indices = @transform_0, window_bounds = array<i64: 16, 2>}, {pipeline_mode = #tpu.pipeline_mode<synchronous>, transform_indices = @transform_1, window_bounds = array<i64: 2, 16>}, {transform_indices = @transform_2, window_bounds = array<i64: 1, 1, 2, 2>}, {transform_indices = @transform_3, window_bounds = array<i64: 1, 1, 16, 16>}]} {
    %c0 = arith.constant 0 : index
    %c0_0 = arith.constant 0 : index
    %c0_1 = arith.constant 0 : index
    %c0_2 = arith.constant 0 : index
    %0 = vector.load %arg4[%c0, %c0_0, %c0_1, %c0_2] : memref<1x1x2x2xbf16, #tpu.memory_space<vmem>>, vector<1x1x2x2xbf16>
    %1 = vector.shape_cast %0 : vector<1x1x2x2xbf16> to vector<2x2xbf16>
    %2 = arith.extf %1 : vector<2x2xbf16> to vector<2x2xf32>
    %c0_3 = arith.constant 0 : index
    %c0_4 = arith.constant 0 : index
    %3 = vector.load %arg3[%c0_3, %c0_4] : memref<2x16xf32, #tpu.memory_space<vmem>>, vector<2x16xf32>
    %cst = arith.constant dense<0.000000e+00> : vector<2x16xf32>
    %4 = tpu.matmul %2, %3, %cst {dimension_numbers = #tpu.dot_dimension_numbers<[1], [0], [0], [1], [0, 0, 1, 1], [], []>} : vector<2x2xf32>, vector<2x16xf32>, vector<2x16xf32> -> vector<2x16xf32>
    %c0_5 = arith.constant 0 : index
    %c0_6 = arith.constant 0 : index
    %5 = vector.load %arg2[%c0_5, %c0_6] : memref<16x2xf32, #tpu.memory_space<vmem>>, vector<16x2xf32>
    %cst_7 = arith.constant dense<0.000000e+00> : vector<16x16xf32>
    %6 = tpu.matmul %5, %4, %cst_7 {dimension_numbers = #tpu.dot_dimension_numbers<[1], [0], [0], [1], [0, 0, 1, 1], [], []>} : vector<16x2xf32>, vector<2x16xf32>, vector<16x16xf32> -> vector<16x16xf32>
    %c0_8 = arith.constant 0 : index
    %c0_9 = arith.constant 0 : index
    %c0_10 = arith.constant 0 : index
    %c0_11 = arith.constant 0 : index
    %7 = vector.load %arg5[%c0_8, %c0_9, %c0_10, %c0_11] : memref<1x1x16x16xf32, #tpu.memory_space<vmem>>, vector<1x1x16x16xf32>
    %8 = vector.shape_cast %7 : vector<1x1x16x16xf32> to vector<16x16xf32>
    %9 = vector.shape_cast %6 : vector<16x16xf32> to vector<1x1x16x16xf32>
    tpu.vector_store %arg5[%c0_8, %c0_9, %c0_10, %c0_11], %9 {strides = array<i32>} : memref<1x1x16x16xf32, #tpu.memory_space<vmem>>, vector<1x1x16x16xf32>,
    return
  }
  func.func @transform_0(%arg0: i32, %arg1: i32) -> (i32, i32) {
    %c0_i32 = arith.constant 0 : i32
    %c0_i32_0 = arith.constant 0 : i32
    %c0_i32_1 = arith.constant 0 : i32
    return %c0_i32, %c0_i32_0 : i32, i32
  }
  func.func @transform_1(%arg0: i32, %arg1: i32) -> (i32, i32) {
    %c0_i32 = arith.constant 0 : i32
    %c0_i32_0 = arith.constant 0 : i32
    %c0_i32_1 = arith.constant 0 : i32
    return %c0_i32, %c0_i32_0 : i32, i32
  }
  func.func @transform_2(%arg0: i32, %arg1: i32) -> (i32, i32, i32, i32) {
    %c0_i32 = arith.constant 0 : i32
    %c0_i32_0 = arith.constant 0 : i32
    %c0_i32_1 = arith.constant 0 : i32
    return %arg0, %arg1, %c0_i32, %c0_i32_0 : i32, i32, i32, i32
  }
  func.func @transform_3(%arg0: i32, %arg1: i32) -> (i32, i32, i32, i32) {
    %c0_i32 = arith.constant 0 : i32
    %c0_i32_0 = arith.constant 0 : i32
    %c0_i32_1 = arith.constant 0 : i32
    return %arg0, %arg1, %c0_i32, %c0_i32_0 : i32, i32, i32, i32
  }
}

</mosaic_0001>

<llo_original>
// kernel: fast_scnn_forward.6
$region0: #{fast_scnn_forward.6}
  #allocation0 [shape = 'u32[]', space=smem, size = 0x4, offset = 0x4, fixed_abs, tag = 'smem constant byte address 0x4 - core index']
  #allocation1 [shape = 'u32[144,128]{1,0:T(1,128)}', space=vmem, size = 0x12000, scoped, tag = 'internal scratch']
  %s0 = inlined_call_operand.vmem [shape: bf16[128,27], index: 0, kind: input, shape index: {}]
  %s1 = inlined_call_operand.vmem [shape: bf16[27,32], index: 1, kind: input, shape index: {}]
  %s2 = inlined_call_operand.vmem [shape: f32[1,32], index: 2, kind: input, shape index: {}]
  %s3 = inlined_call_operand.vmem [shape: bf16[128,32], index: 3, kind: output, shape index: {}]
  %s4 = sld [smem:[#allocation0]]
  $region22: #{fast_scnn_forward.6} parent=0
    _
  %s6 = ssub.s32 1, %s4
  %s7 = scalar_select 0, %s6, %s4
  // Predicated region
  $region2: #{fast_scnn_forward.6} parent=0 // pred_check
    _
  $region3: #{fast_scnn_forward.6} parent=0 // pred_check_branch
    %9 = sbr.rel (0) target = $region5
  $region4: #{fast_scnn_forward.6} parent=0 // pred_region
    _
  $region5: #{fast_scnn_forward.6} parent=0 // pred_fallthru
    _
  // Predicated region
  $region6: #{fast_scnn_forward.6} parent=0 // pred_check
    _
  $region7: #{fast_scnn_forward.6} parent=0 // pred_check_branch
    %11 = sbr.rel (0) target = $region9
  $region8: #{fast_scnn_forward.6} parent=0 // pred_region
    _
  $region9: #{fast_scnn_forward.6} parent=0 // pred_fallthru
    _
  // Predicated region
  $region10: #{fast_scnn_forward.6} parent=0 // pred_check
    _
  $region11: #{fast_scnn_forward.6} parent=0 // pred_check_branch
    %13 = sbr.rel (0) target = $region13
  $region12: #{fast_scnn_forward.6} parent=0 // pred_region
    _
  $region13: #{fast_scnn_forward.6} parent=0 // pred_fallthru
    _
  %v15 = vld [vmem:[%s0] sm:$0xf]
  %v16 = vld [vmem:[%s0 + $0x4] sm:$0xf]
  %v17 = vld [vmem:[%s0 + $0x8] sm:$0xf]
  %v18 = vld [vmem:[%s0 + $0xc] sm:$0xf]
  %v19 = vld [vmem:[%s0 + $0x10] sm:$0xf]
  %v20 = vld [vmem:[%s0 + $0x14] sm:$0xf]
  %v21 = vld [vmem:[%s0 + $0x18] sm:$0xf]
  %v22 = vld [vmem:[%s0 + $0x1c] sm:$0xf]
  %v23 = vld [vmem:[%s0 + $0x20] sm:$0xf]
  %v24 = vld [vmem:[%s0 + $0x24] sm:$0xf]
  %v25 = vld [vmem:[%s0 + $0x28] sm:$0xf]
  %v26 = vld [vmem:[%s0 + $0x2c] sm:$0xf]
  %v27 = vld [vmem:[%s0 + $0x30] sm:$0xf]
  %v28 = vld [vmem:[%s0 + $0x34] sm:$0xf]
  %v29 = vld [vmem:[%s0 + $0x38] sm:$0xf]
  %v30 = vld [vmem:[%s0 + $0x3c] sm:$0xf]
  %v31 = vld [vmem:[%s1] sm:$0xf]
  %v32 = vld [vmem:[%s1 + $0x4] sm:$0xf]
  %v33 = vld [vmem:[%s1 + $0x8] sm:$0xf]
  %v34 = vld [vmem:[%s1 + $0xc] sm:$0x3]
  %v35 = vld [vmem:[%s2] sm:$0x1]
  %v37 = vlaneseq
  %v38 = vshrl.u32 %v37, 7
  %v39 = vsub.s32 0, %v38
  %v40 = vrot.slane %v35, %v39
  %v58 = vunpack.c.l.b16 %v15
  %v59 = vunpack.c.l.b16 %v16
  %v60 = vunpack.c.l.b16 %v17
  %v61 = vunpack.c.l.b16 %v18
  %v62 = vunpack.c.l.b16 %v19
  %v63 = vunpack.c.l.b16 %v20
  %v64 = vunpack.c.l.b16 %v21
  %v65 = vunpack.c.l.b16 %v22
  %v66 = vunpack.c.l.b16 %v23
  %v67 = vunpack.c.l.b16 %v24
  %v68 = vunpack.c.l.b16 %v25
  %v69 = vunpack.c.l.b16 %v26
  %v70 = vunpack.c.l.b16 %v27
  %v71 = vunpack.c.l.b16 %v28
  %v72 = vunpack.c.l.b16 %v29
  %v73 = vunpack.c.l.b16 %v30
  %v74 = vpack.c.b16 %v59, %v58
  %v75 = vpack.c.b16 %v61, %v60
  %v76 = vpack.c.b16 %v63, %v62
  %v77 = vpack.c.b16 %v65, %v64
  %v78 = vpack.c.b16 %v67, %v66
  %v79 = vpack.c.b16 %v69, %v68
  %v80 = vpack.c.b16 %v71, %v70
  %v81 = vpack.c.b16 %v73, %v72
  %v86 = vunpack.c.l.b16 %v31
  %v87 = vunpack.c.l.b16 %v32
  %v88 = vunpack.c.l.b16 %v33
  %v89 = vunpack.c.l.b16 %v34
  %v90 = vpack.c.b16 %v87, %v86
  %v91 = vpack.c.b16 %v89, %v88
  %vm93 = vcmask 220160
  %v95 = vsel %vm93, %v74, 0
  %v98 = vsel %vm93, %v75, 0
  %v101 = vsel %vm93, %v76, 0
  %v104 = vsel %vm93, %v77, 0
  %v107 = vsel %vm93, %v78, 0
  %v110 = vsel %vm93, %v79, 0
  %v113 = vsel %vm93, %v80, 0
  %v116 = vsel %vm93, %v81, 0
  %vm118 = vcmask 1044480
  %vm119 = vcmask 1045504
  %v120 = vsel %vm118, 4294967295, 65535
  %v121 = vsel %vm119, %v120, 0
  %v123 = vand.u32 %v91, %v121
  %125 = vmatprep.subr.bf16.mxu0 0
  %126 = vmatpush1.bf16.msra.mxu0 %v90
  %127 = vmatprep.subr.bf16.mxu0 0
  %128 = vmatpush1.bf16.msra.mxu0 %v123
  %129 = vmatprep.subr.bf16.mxu0 0
  %130 = vmatpush1.bf16.msra.mxu0 0
  %131 = vmatprep.subr.bf16.mxu0 0
  %132 = vmatpush1.bf16.msra.mxu0 0
  %133 = vmatprep.subr.bf16.mxu0 0
  %134 = vmatpush1.bf16.msra.mxu0 0
  %135 = vmatprep.subr.bf16.mxu0 0
  %136 = vmatpush1.bf16.msra.mxu0 0
  %137 = vmatprep.subr.bf16.mxu0 0
  %138 = vmatpush1.bf16.msra.mxu0 0
  %139 = vmatprep.subr.bf16.mxu0 0
  %140 = vmatpush1.bf16.msra.mxu0 0
  %141 = vmatprep.subr.bf16.mxu0 0
  %142 = vmatpush1.bf16.msra.mxu0 0
  %143 = vmatprep.subr.bf16.mxu0 0
  %144 = vmatpush1.bf16.msra.mxu0 0
  %145 = vmatprep.subr.bf16.mxu0 0
  %146 = vmatpush1.bf16.msra.mxu0 0
  %147 = vmatprep.subr.bf16.mxu0 0
  %148 = vmatpush1.bf16.msra.mxu0 0
  %149 = vmatprep.subr.bf16.mxu0 0
  %150 = vmatpush1.bf16.msra.mxu0 0
  %151 = vmatprep.subr.bf16.mxu0 0
  %152 = vmatpush1.bf16.msra.mxu0 0
  %153 = vmatprep.subr.bf16.mxu0 0
  %154 = vmatpush1.bf16.msra.mxu0 0
  %155 = vmatprep.subr.bf16.mxu0 0
  %156 = vmatpush1.bf16.msra.mxu0 0
  %157 = vmatprep.mubr.bf16.mxu0 0
  %158 = vmatmul.mubr.bf16.gmra.mrb[0].mxu0 %v95
  %v159 = vpop.f32.mrb[0].mxu0
  %v160 = vadd.f32 %v40, %v159
  %v161 = vpop.f32.mrb[0].mxu0
  %v162 = vpop.f32.mrb[0].mxu0
  %v163 = vadd.f32 %v40, %v162
  %v164 = vpop.f32.mrb[0].mxu0
  %165 = vmatprep.mubr.bf16.mxu0 0
  %166 = vmatmul.mubr.bf16.gmra.mrb[0].mxu0 %v98
  %v167 = vpop.f32.mrb[0].mxu0
  %v168 = vadd.f32 %v40, %v167
  %v169 = vpop.f32.mrb[0].mxu0
  %v170 = vpop.f32.mrb[0].mxu0
  %v171 = vadd.f32 %v40, %v170
  %v172 = vpop.f32.mrb[0].mxu0
  %173 = vmatprep.mubr.bf16.mxu0 0
  %174 = vmatmul.mubr.bf16.gmra.mrb[0].mxu0 %v101
  %v175 = vpop.f32.mrb[0].mxu0
  %v176 = vadd.f32 %v40, %v175
  %v177 = vpop.f32.mrb[0].mxu0
  %v178 = vpop.f32.mrb[0].mxu0
  %v179 = vadd.f32 %v40, %v178
  %v180 = vpop.f32.mrb[0].mxu0
  %181 = vmatprep.mubr.bf16.mxu0 0
  %182 = vmatmul.mubr.bf16.gmra.mrb[0].mxu0 %v104
  %v183 = vpop.f32.mrb[0].mxu0
  %v184 = vadd.f32 %v40, %v183
  %v185 = vpop.f32.mrb[0].mxu0
  %v186 = vpop.f32.mrb[0].mxu0
  %v187 = vadd.f32 %v40, %v186
  %v188 = vpop.f32.mrb[0].mxu0
  %189 = vmatprep.mubr.bf16.mxu0 0
  %190 = vmatmul.mubr.bf16.gmra.mrb[0].mxu0 %v107
  %v191 = vpop.f32.mrb[0].mxu0
  %v192 = vadd.f32 %v40, %v191
  %v193 = vpop.f32.mrb[0].mxu0
  %v194 = vpop.f32.mrb[0].mxu0
  %v195 = vadd.f32 %v40, %v194
  %v196 = vpop.f32.mrb[0].mxu0
  %197 = vmatprep.mubr.bf16.mxu0 0
  %198 = vmatmul.mubr.bf16.gmra.mrb[0].mxu0 %v110
  %v199 = vpop.f32.mrb[0].mxu0
  %v200 = vadd.f32 %v40, %v199
  %v201 = vpop.f32.mrb[0].mxu0
  %v202 = vpop.f32.mrb[0].mxu0
  %v203 = vadd.f32 %v40, %v202
  %v204 = vpop.f32.mrb[0].mxu0
  %205 = vmatprep.mubr.bf16.mxu0 0
  %206 = vmatmul.mubr.bf16.gmra.mrb[0].mxu0 %v113
  %v207 = vpop.f32.mrb[0].mxu0
  %v208 = vadd.f32 %v40, %v207
  %v209 = vpop.f32.mrb[0].mxu0
  %v210 = vpop.f32.mrb[0].mxu0
  %v211 = vadd.f32 %v40, %v210
  %v212 = vpop.f32.mrb[0].mxu0
  %213 = vmatprep.mubr.bf16.mxu0 0
  %214 = vmatmul.mubr.bf16.gmra.mrb[0].mxu0 %v116
  %v215 = vpop.f32.mrb[0].mxu0
  %v216 = vadd.f32 %v40, %v215
  %v217 = vpop.f32.mrb[0].mxu0
  %v218 = vpop.f32.mrb[0].mxu0
  %v219 = vadd.f32 %v40, %v218
  %v220 = vpop.f32.mrb[0].mxu0
  %221 = vdwg.mxu0
  %v222 = vmax.f32 %v160, 0.0
  %v223 = vmax.f32 %v163, 0.0
  %v224 = vmax.f32 %v168, 0.0
  %v225 = vmax.f32 %v171, 0.0
  %v226 = vmax.f32 %v176, 0.0
  %v227 = vmax.f32 %v179, 0.0
  %v228 = vmax.f32 %v184, 0.0
  %v229 = vmax.f32 %v187, 0.0
  %v230 = vmax.f32 %v192, 0.0
  %v231 = vmax.f32 %v195, 0.0
  %v232 = vmax.f32 %v200, 0.0
  %v233 = vmax.f32 %v203, 0.0
  %v234 = vmax.f32 %v208, 0.0
  %v235 = vmax.f32 %v211, 0.0
  %v236 = vmax.f32 %v216, 0.0
  %v237 = vmax.f32 %v219, 0.0
  %v238 = vpack.c.bf16 %v223, %v222
  %v239 = vpack.c.bf16 %v225, %v224
  %v240 = vpack.c.bf16 %v227, %v226
  %v241 = vpack.c.bf16 %v229, %v228
  %v242 = vpack.c.bf16 %v231, %v230
  %v243 = vpack.c.bf16 %v233, %v232
  %v244 = vpack.c.bf16 %v235, %v234
  %v245 = vpack.c.bf16 %v237, %v236
  %v254 = vunpack.c.l.b16 %v238
  %v255 = vunpack.c.h.b16 %v238
  %v256 = vunpack.c.l.b16 %v239
  %v257 = vunpack.c.h.b16 %v239
  %v258 = vunpack.c.l.b16 %v240
  %v259 = vunpack.c.h.b16 %v240
  %v260 = vunpack.c.l.b16 %v241
  %v261 = vunpack.c.h.b16 %v241
  %v262 = vunpack.c.l.b16 %v242
  %v263 = vunpack.c.h.b16 %v242
  %v264 = vunpack.c.l.b16 %v243
  %v265 = vunpack.c.h.b16 %v243
  %v266 = vunpack.c.l.b16 %v244
  %v267 = vunpack.c.h.b16 %v244
  %v268 = vunpack.c.l.b16 %v245
  %v269 = vunpack.c.h.b16 %v245
  %v270 = vpack.c.b16 %v254, %v254
  %v271 = vpack.c.b16 %v255, %v255
  %v272 = vpack.c.b16 %v256, %v256
  %v273 = vpack.c.b16 %v257, %v257
  %v274 = vpack.c.b16 %v258, %v258
  %v275 = vpack.c.b16 %v259, %v259
  %v276 = vpack.c.b16 %v260, %v260
  %v277 = vpack.c.b16 %v261, %v261
  %v278 = vpack.c.b16 %v262, %v262
  %v279 = vpack.c.b16 %v263, %v263
  %v280 = vpack.c.b16 %v264, %v264
  %v281 = vpack.c.b16 %v265, %v265
  %v282 = vpack.c.b16 %v266, %v266
  %v283 = vpack.c.b16 %v267, %v267
  %v284 = vpack.c.b16 %v268, %v268
  %v285 = vpack.c.b16 %v269, %v269
  %vm302 = vcmask 257024
  %303 = vst.msk [vmem:[%s3] sm:$0xf] %vm302, %v270
  %304 = vst.msk [vmem:[%s3 + $0x4] sm:$0xf] %vm302, %v271
  %305 = vst.msk [vmem:[%s3 + $0x8] sm:$0xf] %vm302, %v272
  %306 = vst.msk [vmem:[%s3 + $0xc] sm:$0xf] %vm302, %v273
  %307 = vst.msk [vmem:[%s3 + $0x10] sm:$0xf] %vm302, %v274
  %308 = vst.msk [vmem:[%s3 + $0x14] sm:$0xf] %vm302, %v275
  %309 = vst.msk [vmem:[%s3 + $0x18] sm:$0xf] %vm302, %v276
  %310 = vst.msk [vmem:[%s3 + $0x1c] sm:$0xf] %vm302, %v277
  %311 = vst.msk [vmem:[%s3 + $0x20] sm:$0xf] %vm302, %v278
  %312 = vst.msk [vmem:[%s3 + $0x24] sm:$0xf] %vm302, %v279
  %313 = vst.msk [vmem:[%s3 + $0x28] sm:$0xf] %vm302, %v280
  %314 = vst.msk [vmem:[%s3 + $0x2c] sm:$0xf] %vm302, %v281
  %315 = vst.msk [vmem:[%s3 + $0x30] sm:$0xf] %vm302, %v282
  %316 = vst.msk [vmem:[%s3 + $0x34] sm:$0xf] %vm302, %v283
  %317 = vst.msk [vmem:[%s3 + $0x38] sm:$0xf] %vm302, %v284
  %318 = vst.msk [vmem:[%s3 + $0x3c] sm:$0xf] %vm302, %v285
  // Predicated region
  $region14: #{fast_scnn_forward.6} parent=0 // pred_check
    _
  $region15: #{fast_scnn_forward.6} parent=0 // pred_check_branch
    %320 = sbr.rel (0) target = $region17
  $region16: #{fast_scnn_forward.6} parent=0 // pred_region
    _
  $region17: #{fast_scnn_forward.6} parent=0 // pred_fallthru
    _
  // Predicated region
  $region18: #{fast_scnn_forward.6} parent=0 // pred_check
    _
  $region19: #{fast_scnn_forward.6} parent=0 // pred_check_branch
    %322 = sbr.rel (0) target = $region21
  $region20: #{fast_scnn_forward.6} parent=0 // pred_region
    _
  $region21: #{fast_scnn_forward.6} parent=0 // pred_fallthru
    _

// kernel: fast_scnn_forward.7
$region0: #{fast_scnn_forward.7}
  #allocation0 [shape = 'u32[]', space=smem, size = 0x4, offset = 0x4, fixed_abs, tag = 'smem constant byte address 0x4 - core index']
  #allocation1 [shape = 'u32[144,128]{1,0:T(1,128)}', space=vmem, size = 0x12000, scoped, tag = 'internal scratch']
  %s0 = inlined_call_operand.vmem [shape: bf16[32,288], index: 0, kind: input, shape index: {}]
  %s1 = inlined_call_operand.vmem [shape: bf16[288,48], index: 1, kind: input, shape index: {}]
  %s2 = inlined_call_operand.vmem [shape: f32[1,48], index: 2, kind: input, shape index: {}]
  %s3 = inlined_call_operand.vmem [shape: bf16[32,48], index: 3, kind: output, shape index: {}]
  %s4 = sld [smem:[#allocation0]]
  $region22: #{fast_scnn_forward.7} parent=0
    _
  %s6 = ssub.s32 1, %s4
  %s7 = scalar_select 0, %s6, %s4
  // Predicated region
  $region2: #{fast_scnn_forward.7} parent=0 // pred_check
    _
  $region3: #{fast_scnn_forward.7} parent=0 // pred_check_branch
    %9 = sbr.rel (0) target = $region5
  $region4: #{fast_scnn_forward.7} parent=0 // pred_region
    _
  $region5: #{fast_scnn_forward.7} parent=0 // pred_fallthru
    _
  // Predicated region
  $region6: #{fast_scnn_forward.7} parent=0 // pred_check
    _
  $region7: #{fast_scnn_forward.7} parent=0 // pred_check_branch
    %11 = sbr.rel (0) target = $region9
  $region8: #{fast_scnn_forward.7} parent=0 // pred_region
    _
  $region9: #{fast_scnn_forward.7} parent=0 // pred_fallthru
    _
  // Predicated region
  $region10: #{fast_scnn_forward.7} parent=0 // pred_check
    _
  $region11: #{fast_scnn_forward.7} parent=0 // pred_check_branch
    %13 = sbr.rel (0) target = $region13
  $region12: #{fast_scnn_forward.7} parent=0 // pred_region
    _
  $region13: #{fast_scnn_forward.7} parent=0 // pred_fallthru
    _
  %v15 = vld [vmem:[%s0] sm:$0xff]
  %v16 = vld [vmem:[%s0 + $0x8] sm:$0xf]
  %v17 = vld [vmem:[%s0 + $0xc] sm:$0xff]
  %v18 = vld [vmem:[%s0 + $0x14] sm:$0xf]
  %v19 = vld [vmem:[%s0 + $0x18] sm:$0xff]
  %v20 = vld [vmem:[%s0 + $0x20] sm:$0xf]
  %v21 = vld [vmem:[%s0 + $0x24] sm:$0xff]
  %v22 = vld [vmem:[%s0 + $0x2c] sm:$0xf]
  %v23 = vld [vmem:[%s1] sm:$0xf]
  %v24 = vld [vmem:[%s1 + $0x4] sm:$0xf]
  %v25 = vld [vmem:[%s1 + $0x8] sm:$0xf]
  %v26 = vld [vmem:[%s1 + $0xc] sm:$0xf]
  %v27 = vld [vmem:[%s1 + $0x10] sm:$0xf]
  %v28 = vld [vmem:[%s1 + $0x14] sm:$0xf]
  %v29 = vld [vmem:[%s1 + $0x18] sm:$0xf]
  %v30 = vld [vmem:[%s1 + $0x1c] sm:$0xf]
  %v31 = vld [vmem:[%s1 + $0x20] sm:$0xf]
  %v32 = vld [vmem:[%s1 + $0x24] sm:$0xf]
  %v33 = vld [vmem:[%s1 + $0x28] sm:$0xf]
  %v34 = vld [vmem:[%s1 + $0x2c] sm:$0xf]
  %v35 = vld [vmem:[%s1 + $0x30] sm:$0xf]
  %v36 = vld [vmem:[%s1 + $0x34] sm:$0xf]
  %v37 = vld [vmem:[%s1 + $0x38] sm:$0xf]
  %v38 = vld [vmem:[%s1 + $0x3c] sm:$0xf]
  %v39 = vld [vmem:[%s1 + $0x40] sm:$0xf]
  %v40 = vld [vmem:[%s1 + $0x44] sm:$0xf]
  %v41 = vld [vmem:[%s1 + $0x48] sm:$0xf]
  %v42 = vld [vmem:[%s1 + $0x4c] sm:$0xf]
  %v43 = vld [vmem:[%s1 + $0x50] sm:$0xf]
  %v44 = vld [vmem:[%s1 + $0x54] sm:$0xf]
  %v45 = vld [vmem:[%s1 + $0x58] sm:$0xf]
  %v46 = vld [vmem:[%s1 + $0x5c] sm:$0xf]
  %v47 = vld [vmem:[%s1 + $0x60] sm:$0xf]
  %v48 = vld [vmem:[%s1 + $0x64] sm:$0xf]
  %v49 = vld [vmem:[%s1 + $0x68] sm:$0xf]
  %v50 = vld [vmem:[%s1 + $0x6c] sm:$0xf]
  %v51 = vld [vmem:[%s1 + $0x70] sm:$0xf]
  %v52 = vld [vmem:[%s1 + $0x74] sm:$0xf]
  %v53 = vld [vmem:[%s1 + $0x78] sm:$0xf]
  %v54 = vld [vmem:[%s1 + $0x7c] sm:$0xf]
  %v55 = vld [vmem:[%s1 + $0x80] sm:$0xf]
  %v56 = vld [vmem:[%s1 + $0x84] sm:$0xf]
  %v57 = vld [vmem:[%s1 + $0x88] sm:$0xf]
  %v58 = vld [vmem:[%s1 + $0x8c] sm:$0xf]
  %v59 = vld [vmem:[%s2] sm:$0x1]
  %v61 = vlaneseq
  %v62 = vshrl.u32 %v61, 7
  %v63 = vsub.s32 0, %v62
  %v64 = vrot.slane %v59, %v63
  %v74 = vunpack.c.l.b16 %v15
  %v75 = vunpack.c.h.b16 %v15
  %v76 = vunpack.c.l.b16 %v16
  %v77 = vunpack.c.l.b16 %v17
  %v78 = vunpack.c.h.b16 %v17
  %v79 = vunpack.c.l.b16 %v18
  %v80 = vunpack.c.l.b16 %v19
  %v81 = vunpack.c.h.b16 %v19
  %v82 = vunpack.c.l.b16 %v20
  %v83 = vunpack.c.l.b16 %v21
  %v84 = vunpack.c.h.b16 %v21
  %v85 = vunpack.c.l.b16 %v22
  %v86 = vpack.c.b16 %v77, %v74
  %v87 = vpack.c.b16 %v78, %v75
  %v88 = vpack.c.b16 %v79, %v76
  %v89 = vpack.c.b16 %v83, %v80
  %v90 = vpack.c.b16 %v84, %v81
  %v91 = vpack.c.b16 %v85, %v82
  %v132 = vunpack.c.l.b16 %v23
  %v133 = vunpack.c.l.b16 %v24
  %v134 = vunpack.c.l.b16 %v25
  %v135 = vunpack.c.l.b16 %v26
  %v136 = vunpack.c.l.b16 %v27
  %v137 = vunpack.c.l.b16 %v28
  %v138 = vunpack.c.l.b16 %v29
  %v139 = vunpack.c.l.b16 %v30
  %v140 = vunpack.c.l.b16 %v31
  %v141 = vunpack.c.l.b16 %v32
  %v142 = vunpack.c.l.b16 %v33
  %v143 = vunpack.c.l.b16 %v34
  %v144 = vunpack.c.l.b16 %v35
  %v145 = vunpack.c.l.b16 %v36
  %v146 = vunpack.c.l.b16 %v37
  %v147 = vunpack.c.l.b16 %v38
  %v148 = vunpack.c.l.b16 %v39
  %v149 = vunpack.c.l.b16 %v40
  %v150 = vunpack.c.l.b16 %v41
  %v151 = vunpack.c.l.b16 %v42
  %v152 = vunpack.c.l.b16 %v43
  %v153 = vunpack.c.l.b16 %v44
  %v154 = vunpack.c.l.b16 %v45
  %v155 = vunpack.c.l.b16 %v46
  %v156 = vunpack.c.l.b16 %v47
  %v157 = vunpack.c.l.b16 %v48
  %v158 = vunpack.c.l.b16 %v49
  %v159 = vunpack.c.l.b16 %v50
  %v160 = vunpack.c.l.b16 %v51
  %v161 = vunpack.c.l.b16 %v52
  %v162 = vunpack.c.l.b16 %v53
  %v163 = vunpack.c.l.b16 %v54
  %v164 = vunpack.c.l.b16 %v55
  %v165 = vunpack.c.l.b16 %v56
  %v166 = vunpack.c.l.b16 %v57
  %v167 = vunpack.c.l.b16 %v58
  %v168 = vpack.c.b16 %v133, %v132
  %v169 = vpack.c.b16 %v135, %v134
  %v170 = vpack.c.b16 %v137, %v136
  %v171 = vpack.c.b16 %v139, %v138
  %v172 = vpack.c.b16 %v141, %v140
  %v173 = vpack.c.b16 %v143, %v142
  %v174 = vpack.c.b16 %v145, %v144
  %v175 = vpack.c.b16 %v147, %v146
  %v176 = vpack.c.b16 %v149, %v148
  %v177 = vpack.c.b16 %v151, %v150
  %v178 = vpack.c.b16 %v153, %v152
  %v179 = vpack.c.b16 %v155, %v154
  %v180 = vpack.c.b16 %v157, %v156
  %v181 = vpack.c.b16 %v159, %v158
  %v182 = vpack.c.b16 %v161, %v160
  %v183 = vpack.c.b16 %v163, %v162
  %v184 = vpack.c.b16 %v165, %v164
  %v185 = vpack.c.b16 %v167, %v166
  %vm204 = vcmask 261120
  %v206 = vsel %vm204, %v88, 0
  %v209 = vsel %vm204, %v91, 0
  %211 = vmatprep.subr.bf16.mxu0 0
  %212 = vmatpush1.bf16.msra.mxu0 %v168
  %213 = vmatprep.subr.bf16.mxu0 0
  %214 = vmatpush1.bf16.msra.mxu0 %v169
  %215 = vmatprep.subr.bf16.mxu0 0
  %216 = vmatpush1.bf16.msra.mxu0 %v170
  %217 = vmatprep.subr.bf16.mxu0 0
  %218 = vmatpush1.bf16.msra.mxu0 %v171
  %219 = vmatprep.subr.bf16.mxu0 0
  %220 = vmatpush1.bf16.msra.mxu0 %v172
  %221 = vmatprep.subr.bf16.mxu0 0
  %222 = vmatpush1.bf16.msra.mxu0 %v173
  %223 = vmatprep.subr.bf16.mxu0 0
  %224 = vmatpush1.bf16.msra.mxu0 %v174
  %225 = vmatprep.subr.bf16.mxu0 0
  %226 = vmatpush1.bf16.msra.mxu0 %v175
  %227 = vmatprep.subr.bf16.mxu0 0
  %228 = vmatpush1.bf16.msra.mxu0 %v176
  %229 = vmatprep.subr.bf16.mxu0 0
  %230 = vmatpush1.bf16.msra.mxu0 %v177
  %231 = vmatprep.subr.bf16.mxu0 0
  %232 = vmatpush1.bf16.msra.mxu0 %v178
  %233 = vmatprep.subr.bf16.mxu0 0
  %234 = vmatpush1.bf16.msra.mxu0 %v179
  %235 = vmatprep.subr.bf16.mxu0 0
  %236 = vmatpush1.bf16.msra.mxu0 %v180
  %237 = vmatprep.subr.bf16.mxu0 0
  %238 = vmatpush1.bf16.msra.mxu0 %v181
  %239 = vmatprep.subr.bf16.mxu0 0
  %240 = vmatpush1.bf16.msra.mxu0 %v182
  %241 = vmatprep.subr.bf16.mxu0 0
  %242 = vmatpush1.bf16.msra.mxu0 %v183
  %243 = vmatprep.mubr.bf16.mxu0 %v87
  %244 = vmatmul.mubr.bf16.gmra.mrb[0].mxu0 %v86
  %v245 = vpop.f32.mrb[0].mxu0
  %v246 = vadd.f32 %v64, %v245
  %v247 = vpop.f32.mrb[0].mxu0
  %v248 = vpop.f32.mrb[0].mxu0
  %v249 = vadd.f32 %v64, %v248
  %v250 = vpop.f32.mrb[0].mxu0
  %251 = vmatprep.mubr.bf16.mxu0 %v90
  %252 = vmatmul.mubr.bf16.gmra.mrb[0].mxu0 %v89
  %v253 = vpop.f32.mrb[0].mxu0
  %v254 = vadd.f32 %v64, %v253
  %v255 = vpop.f32.mrb[0].mxu0
  %v256 = vpop.f32.mrb[0].mxu0
  %v257 = vadd.f32 %v64, %v256
  %v258 = vpop.f32.mrb[0].mxu0
  %259 = vdwg.mxu0
  %260 = vmatprep.subr.bf16.mxu0 0
  %261 = vmatpush1.bf16.msra.mxu0 %v184
  %262 = vmatprep.subr.bf16.mxu0 0
  %263 = vmatpush1.bf16.msra.mxu0 %v185
  %264 = vmatprep.subr.bf16.mxu0 0
  %265 = vmatpush1.bf16.msra.mxu0 0
  %266 = vmatprep.subr.bf16.mxu0 0
  %267 = vmatpush1.bf16.msra.mxu0 0
  %268 = vmatprep.subr.bf16.mxu0 0
  %269 = vmatpush1.bf16.msra.mxu0 0
  %270 = vmatprep.subr.bf16.mxu0 0
  %271 = vmatpush1.bf16.msra.mxu0 0
  %272 = vmatprep.subr.bf16.mxu0 0
  %273 = vmatpush1.bf16.msra.mxu0 0
  %274 = vmatprep.subr.bf16.mxu0 0
  %275 = vmatpush1.bf16.msra.mxu0 0
  %276 = vmatprep.subr.bf16.mxu0 0
  %277 = vmatpush1.bf16.msra.mxu0 0
  %278 = vmatprep.subr.bf16.mxu0 0
  %279 = vmatpush1.bf16.msra.mxu0 0
  %280 = vmatprep.subr.bf16.mxu0 0
  %281 = vmatpush1.bf16.msra.mxu0 0
  %282 = vmatprep.subr.bf16.mxu0 0
  %283 = vmatpush1.bf16.msra.mxu0 0
  %284 = vmatprep.subr.bf16.mxu0 0
  %285 = vmatpush1.bf16.msra.mxu0 0
  %286 = vmatprep.subr.bf16.mxu0 0
  %287 = vmatpush1.bf16.msra.mxu0 0
  %288 = vmatprep.subr.bf16.mxu0 0
  %289 = vmatpush1.bf16.msra.mxu0 0
  %290 = vmatprep.subr.bf16.mxu0 0
  %291 = vmatpush1.bf16.msra.mxu0 0
  %292 = vmatprep.mubr.bf16.mxu0 0
  %293 = vmatmul.mubr.bf16.gmra.mrb[0].mxu0 %v206
  %v294 = vpop.f32.mrb[0].mxu0
  %v295 = vadd.f32 %v246, %v294
  %v296 = vpop.f32.mrb[0].mxu0
  %v297 = vpop.f32.mrb[0].mxu0
  %v298 = vadd.f32 %v249, %v297
  %v299 = vpop.f32.mrb[0].mxu0
  %300 = vmatprep.mubr.bf16.mxu0 0
  %301 = vmatmul.mubr.bf16.gmra.mrb[0].mxu0 %v209
  %v302 = vpop.f32.mrb[0].mxu0
  %v303 = vadd.f32 %v254, %v302
  %v304 = vpop.f32.mrb[0].mxu0
  %v305 = vpop.f32.mrb[0].mxu0
  %v306 = vadd.f32 %v257, %v305
  %v307 = vpop.f32.mrb[0].mxu0
  %308 = vdwg.mxu0
  %v309 = vmax.f32 %v295, 0.0
  %v310 = vmax.f32 %v298, 0.0
  %v311 = vmax.f32 %v303, 0.0
  %v312 = vmax.f32 %v306, 0.0
  %v313 = vpack.c.bf16 %v310, %v309
  %v314 = vpack.c.bf16 %v312, %v311
  %v317 = vunpack.c.l.b16 %v313
  %v318 = vunpack.c.h.b16 %v313
  %v319 = vunpack.c.l.b16 %v314
  %v320 = vunpack.c.h.b16 %v314
  %v321 = vpack.c.b16 %v317, %v317
  %v322 = vpack.c.b16 %v318, %v318
  %v323 = vpack.c.b16 %v319, %v319
  %v324 = vpack.c.b16 %v320, %v320
  %vm329 = vcmask 388096
  %330 = vst.msk [vmem:[%s3] sm:$0xf] %vm329, %v321
  %331 = vst.msk [vmem:[%s3 + $0x4] sm:$0xf] %vm329, %v322
  %332 = vst.msk [vmem:[%s3 + $0x8] sm:$0xf] %vm329, %v323
  %333 = vst.msk [vmem:[%s3 + $0xc] sm:$0xf] %vm329, %v324
  // Predicated region
  $region14: #{fast_scnn_forward.7} parent=0 // pred_check
    _
  $region15: #{fast_scnn_forward.7} parent=0 // pred_check_branch
    %335 = sbr.rel (0) target = $region17
  $region16: #{fast_scnn_forward.7} parent=0 // pred_region
    _
  $region17: #{fast_scnn_forward.7} parent=0 // pred_fallthru
    _
  // Predicated region
  $region18: #{fast_scnn_forward.7} parent=0 // pred_check
    _
  $region19: #{fast_scnn_forward.7} parent=0 // pred_check_branch
    %337 = sbr.rel (0) target = $region21
  $region20: #{fast_scnn_forward.7} parent=0 // pred_region
    _
  $region21: #{fast_scnn_forward.7} parent=0 // pred_fallthru
    _

// kernel: fast_scnn_forward.8
$region0: #{fast_scnn_forward.8}
  #allocation0 [shape = 'u32[]', space=smem, size = 0x4, offset = 0x4, fixed_abs, tag = 'smem constant byte address 0x4 - core index']
  #allocation1 [shape = 'u32[144,128]{1,0:T(1,128)}', space=vmem, size = 0x12000, scoped, tag = 'internal scratch']
  %s0 = inlined_call_operand.vmem [shape: bf16[8,432], index: 0, kind: input, shape index: {}]
  %s1 = inlined_call_operand.vmem [shape: bf16[432,128], index: 1, kind: input, shape index: {}]
  %s2 = inlined_call_operand.vmem [shape: f32[1,128], index: 2, kind: input, shape index: {}]
  %s3 = inlined_call_operand.vmem [shape: bf16[8,128], index: 3, kind: output, shape index: {}]
  %s4 = sld [smem:[#allocation0]]
  $region22: #{fast_scnn_forward.8} parent=0
    _
  %s6 = ssub.s32 1, %s4
  %s7 = scalar_select 0, %s6, %s4
  // Predicated region
  $region2: #{fast_scnn_forward.8} parent=0 // pred_check
    _
  $region3: #{fast_scnn_forward.8} parent=0 // pred_check_branch
    %9 = sbr.rel (0) target = $region5
  $region4: #{fast_scnn_forward.8} parent=0 // pred_region
    _
  $region5: #{fast_scnn_forward.8} parent=0 // pred_fallthru
    _
  // Predicated region
  $region6: #{fast_scnn_forward.8} parent=0 // pred_check
    _
  $region7: #{fast_scnn_forward.8} parent=0 // pred_check_branch
    %11 = sbr.rel (0) target = $region9
  $region8: #{fast_scnn_forward.8} parent=0 // pred_region
    _
  $region9: #{fast_scnn_forward.8} parent=0 // pred_fallthru
    _
  // Predicated region
  $region10: #{fast_scnn_forward.8} parent=0 // pred_check
    _
  $region11: #{fast_scnn_forward.8} parent=0 // pred_check_branch
    %13 = sbr.rel (0) target = $region13
  $region12: #{fast_scnn_forward.8} parent=0 // pred_region
    _
  $region13: #{fast_scnn_forward.8} parent=0 // pred_fallthru
    _
  %v15 = vld [vmem:[%s0] sm:$0xff]
  %v16 = vld [vmem:[%s0 + $0x8] sm:$0xff]
  %v17 = vld [vmem:[%s1] sm:$0xf]
  %v18 = vld [vmem:[%s1 + $0x4] sm:$0xf]
  %v19 = vld [vmem:[%s1 + $0x8] sm:$0xf]
  %v20 = vld [vmem:[%s1 + $0xc] sm:$0xf]
  %v21 = vld [vmem:[%s1 + $0x10] sm:$0xf]
  %v22 = vld [vmem:[%s1 + $0x14] sm:$0xf]
  %v23 = vld [vmem:[%s1 + $0x18] sm:$0xf]
  %v24 = vld [vmem:[%s1 + $0x1c] sm:$0xf]
  %v25 = vld [vmem:[%s1 + $0x20] sm:$0xf]
  %v26 = vld [vmem:[%s1 + $0x24] sm:$0xf]
  %v27 = vld [vmem:[%s1 + $0x28] sm:$0xf]
  %v28 = vld [vmem:[%s1 + $0x2c] sm:$0xf]
  %v29 = vld [vmem:[%s1 + $0x30] sm:$0xf]
  %v30 = vld [vmem:[%s1 + $0x34] sm:$0xf]
  %v31 = vld [vmem:[%s1 + $0x38] sm:$0xf]
  %v32 = vld [vmem:[%s1 + $0x3c] sm:$0xf]
  %v33 = vld [vmem:[%s1 + $0x40] sm:$0xf]
  %v34 = vld [vmem:[%s1 + $0x44] sm:$0xf]
  %v35 = vld [vmem:[%s1 + $0x48] sm:$0xf]
  %v36 = vld [vmem:[%s1 + $0x4c] sm:$0xf]
  %v37 = vld [vmem:[%s1 + $0x50] sm:$0xf]
  %v38 = vld [vmem:[%s1 + $0x54] sm:$0xf]
  %v39 = vld [vmem:[%s1 + $0x58] sm:$0xf]
  %v40 = vld [vmem:[%s1 + $0x5c] sm:$0xf]
  %v41 = vld [vmem:[%s1 + $0x60] sm:$0xf]
  %v42 = vld [vmem:[%s1 + $0x64] sm:$0xf]
  %v43 = vld [vmem:[%s1 + $0x68] sm:$0xf]
  %v44 = vld [vmem:[%s1 + $0x6c] sm:$0xf]
  %v45 = vld [vmem:[%s1 + $0x70] sm:$0xf]
  %v46 = vld [vmem:[%s1 + $0x74] sm:$0xf]
  %v47 = vld [vmem:[%s1 + $0x78] sm:$0xf]
  %v48 = vld [vmem:[%s1 + $0x7c] sm:$0xf]
  %v49 = vld [vmem:[%s1 + $0x80] sm:$0xf]
  %v50 = vld [vmem:[%s1 + $0x84] sm:$0xf]
  %v51 = vld [vmem:[%s1 + $0x88] sm:$0xf]
  %v52 = vld [vmem:[%s1 + $0x8c] sm:$0xf]
  %v53 = vld [vmem:[%s1 + $0x90] sm:$0xf]
  %v54 = vld [vmem:[%s1 + $0x94] sm:$0xf]
  %v55 = vld [vmem:[%s1 + $0x98] sm:$0xf]
  %v56 = vld [vmem:[%s1 + $0x9c] sm:$0xf]
  %v57 = vld [vmem:[%s1 + $0xa0] sm:$0xf]
  %v58 = vld [vmem:[%s1 + $0xa4] sm:$0xf]
  %v59 = vld [vmem:[%s1 + $0xa8] sm:$0xf]
  %v60 = vld [vmem:[%s1 + $0xac] sm:$0xf]
  %v61 = vld [vmem:[%s1 + $0xb0] sm:$0xf]
  %v62 = vld [vmem:[%s1 + $0xb4] sm:$0xf]
  %v63 = vld [vmem:[%s1 + $0xb8] sm:$0xf]
  %v64 = vld [vmem:[%s1 + $0xbc] sm:$0xf]
  %v65 = vld [vmem:[%s1 + $0xc0] sm:$0xf]
  %v66 = vld [vmem:[%s1 + $0xc4] sm:$0xf]
  %v67 = vld [vmem:[%s1 + $0xc8] sm:$0xf]
  %v68 = vld [vmem:[%s1 + $0xcc] sm:$0xf]
  %v69 = vld [vmem:[%s1 + $0xd0] sm:$0xf]
  %v70 = vld [vmem:[%s1 + $0xd4] sm:$0xf]
  %v71 = vld [vmem:[%s2] sm:$0x1]
  %v73 = vlaneseq
  %v74 = vshrl.u32 %v73, 7
  %v75 = vsub.s32 0, %v74
  %v76 = vrot.slane %v71, %v75
  %v80 = vunpack.c.l.b16 %v15
  %v81 = vunpack.c.h.b16 %v15
  %v82 = vunpack.c.l.b16 %v16
  %v83 = vunpack.c.h.b16 %v16
  %v84 = vpack.c.b16 %v80, %v80
  %v85 = vpack.c.b16 %v81, %v81
  %v86 = vpack.c.b16 %v82, %v82
  %v87 = vpack.c.b16 %v83, %v83
  %v145 = vunpack.c.l.b16 %v17
  %v146 = vunpack.c.l.b16 %v18
  %v147 = vunpack.c.l.b16 %v19
  %v148 = vunpack.c.l.b16 %v20
  %v149 = vunpack.c.l.b16 %v21
  %v150 = vunpack.c.l.b16 %v22
  %v151 = vunpack.c.l.b16 %v23
  %v152 = vunpack.c.l.b16 %v24
  %v153 = vunpack.c.l.b16 %v25
  %v154 = vunpack.c.l.b16 %v26
  %v155 = vunpack.c.l.b16 %v27
  %v156 = vunpack.c.l.b16 %v28
  %v157 = vunpack.c.l.b16 %v29
  %v158 = vunpack.c.l.b16 %v30
  %v159 = vunpack.c.l.b16 %v31
  %v160 = vunpack.c.l.b16 %v32
  %v161 = vunpack.c.l.b16 %v33
  %v162 = vunpack.c.l.b16 %v34
  %v163 = vunpack.c.l.b16 %v35
  %v164 = vunpack.c.l.b16 %v36
  %v165 = vunpack.c.l.b16 %v37
  %v166 = vunpack.c.l.b16 %v38
  %v167 = vunpack.c.l.b16 %v39
  %v168 = vunpack.c.l.b16 %v40
  %v169 = vunpack.c.l.b16 %v41
  %v170 = vunpack.c.l.b16 %v42
  %v171 = vunpack.c.l.b16 %v43
  %v172 = vunpack.c.l.b16 %v44
  %v173 = vunpack.c.l.b16 %v45
  %v174 = vunpack.c.l.b16 %v46
  %v175 = vunpack.c.l.b16 %v47
  %v176 = vunpack.c.l.b16 %v48
  %v177 = vunpack.c.l.b16 %v49
  %v178 = vunpack.c.l.b16 %v50
  %v179 = vunpack.c.l.b16 %v51
  %v180 = vunpack.c.l.b16 %v52
  %v181 = vunpack.c.l.b16 %v53
  %v182 = vunpack.c.l.b16 %v54
  %v183 = vunpack.c.l.b16 %v55
  %v184 = vunpack.c.l.b16 %v56
  %v185 = vunpack.c.l.b16 %v57
  %v186 = vunpack.c.l.b16 %v58
  %v187 = vunpack.c.l.b16 %v59
  %v188 = vunpack.c.l.b16 %v60
  %v189 = vunpack.c.l.b16 %v61
  %v190 = vunpack.c.l.b16 %v62
  %v191 = vunpack.c.l.b16 %v63
  %v192 = vunpack.c.l.b16 %v64
  %v193 = vunpack.c.l.b16 %v65
  %v194 = vunpack.c.l.b16 %v66
  %v195 = vunpack.c.l.b16 %v67
  %v196 = vunpack.c.l.b16 %v68
  %v197 = vunpack.c.l.b16 %v69
  %v198 = vunpack.c.l.b16 %v70
  %v199 = vpack.c.b16 %v146, %v145
  %v200 = vpack.c.b16 %v148, %v147
  %v201 = vpack.c.b16 %v150, %v149
  %v202 = vpack.c.b16 %v152, %v151
  %v203 = vpack.c.b16 %v154, %v153
  %v204 = vpack.c.b16 %v156, %v155
  %v205 = vpack.c.b16 %v158, %v157
  %v206 = vpack.c.b16 %v160, %v159
  %v207 = vpack.c.b16 %v162, %v161
  %v208 = vpack.c.b16 %v164, %v163
  %v209 = vpack.c.b16 %v166, %v165
  %v210 = vpack.c.b16 %v168, %v167
  %v211 = vpack.c.b16 %v170, %v169
  %v212 = vpack.c.b16 %v172, %v171
  %v213 = vpack.c.b16 %v174, %v173
  %v214 = vpack.c.b16 %v176, %v175
  %v215 = vpack.c.b16 %v178, %v177
  %v216 = vpack.c.b16 %v180, %v179
  %v217 = vpack.c.b16 %v182, %v181
  %v218 = vpack.c.b16 %v184, %v183
  %v219 = vpack.c.b16 %v186, %v185
  %v220 = vpack.c.b16 %v188, %v187
  %v221 = vpack.c.b16 %v190, %v189
  %v222 = vpack.c.b16 %v192, %v191
  %v223 = vpack.c.b16 %v194, %v193
  %v224 = vpack.c.b16 %v196, %v195
  %v225 = vpack.c.b16 %v198, %v197
  %vm253 = vcmask 392192
  %v255 = vsel %vm253, %v87, 0
  %257 = vmatprep.subr.bf16.mxu0 0
  %258 = vmatpush1.bf16.msra.mxu0 %v199
  %259 = vmatprep.subr.bf16.mxu0 0
  %260 = vmatpush1.bf16.msra.mxu0 %v200
  %261 = vmatprep.subr.bf16.mxu0 0
  %262 = vmatpush1.bf16.msra.mxu0 %v201
  %263 = vmatprep.subr.bf16.mxu0 0
  %264 = vmatpush1.bf16.msra.mxu0 %v202
  %265 = vmatprep.subr.bf16.mxu0 0
  %266 = vmatpush1.bf16.msra.mxu0 %v203
  %267 = vmatprep.subr.bf16.mxu0 0
  %268 = vmatpush1.bf16.msra.mxu0 %v204
  %269 = vmatprep.subr.bf16.mxu0 0
  %270 = vmatpush1.bf16.msra.mxu0 %v205
  %271 = vmatprep.subr.bf16.mxu0 0
  %272 = vmatpush1.bf16.msra.mxu0 %v206
  %273 = vmatprep.subr.bf16.mxu0 0
  %274 = vmatpush1.bf16.msra.mxu0 %v207
  %275 = vmatprep.subr.bf16.mxu0 0
  %276 = vmatpush1.bf16.msra.mxu0 %v208
  %277 = vmatprep.subr.bf16.mxu0 0
  %278 = vmatpush1.bf16.msra.mxu0 %v209
  %279 = vmatprep.subr.bf16.mxu0 0
  %280 = vmatpush1.bf16.msra.mxu0 %v210
  %281 = vmatprep.subr.bf16.mxu0 0
  %282 = vmatpush1.bf16.msra.mxu0 %v211
  %283 = vmatprep.subr.bf16.mxu0 0
  %284 = vmatpush1.bf16.msra.mxu0 %v212
  %285 = vmatprep.subr.bf16.mxu0 0
  %286 = vmatpush1.bf16.msra.mxu0 %v213
  %287 = vmatprep.subr.bf16.mxu0 0
  %288 = vmatpush1.bf16.msra.mxu0 %v214
  %289 = vmatprep.mubr.bf16.mxu0 %v85
  %290 = vmatmul.mubr.bf16.gmra.mrb[0].mxu0 %v84
  %v291 = vpop.f32.mrb[0].mxu0
  %v292 = vadd.f32 %v76, %v291
  %v293 = vpop.f32.mrb[0].mxu0
  %v294 = vpop.f32.mrb[0].mxu0
  %v295 = vpop.f32.mrb[0].mxu0
  %296 = vdwg.mxu0
  %297 = vmatprep.subr.bf16.mxu0 0
  %298 = vmatpush1.bf16.msra.mxu0 %v215
  %299 = vmatprep.subr.bf16.mxu0 0
  %300 = vmatpush1.bf16.msra.mxu0 %v216
  %301 = vmatprep.subr.bf16.mxu0 0
  %302 = vmatpush1.bf16.msra.mxu0 %v217
  %303 = vmatprep.subr.bf16.mxu0 0
  %304 = vmatpush1.bf16.msra.mxu0 %v218
  %305 = vmatprep.subr.bf16.mxu0 0
  %306 = vmatpush1.bf16.msra.mxu0 %v219
  %307 = vmatprep.subr.bf16.mxu0 0
  %308 = vmatpush1.bf16.msra.mxu0 %v220
  %309 = vmatprep.subr.bf16.mxu0 0
  %310 = vmatpush1.bf16.msra.mxu0 %v221
  %311 = vmatprep.subr.bf16.mxu0 0
  %312 = vmatpush1.bf16.msra.mxu0 %v222
  %313 = vmatprep.subr.bf16.mxu0 0
  %314 = vmatpush1.bf16.msra.mxu0 %v223
  %315 = vmatprep.subr.bf16.mxu0 0
  %316 = vmatpush1.bf16.msra.mxu0 %v224
  %317 = vmatprep.subr.bf16.mxu0 0
  %318 = vmatpush1.bf16.msra.mxu0 %v225
  %319 = vmatprep.subr.bf16.mxu0 0
  %320 = vmatpush1.bf16.msra.mxu0 0
  %321 = vmatprep.subr.bf16.mxu0 0
  %322 = vmatpush1.bf16.msra.mxu0 0
  %323 = vmatprep.subr.bf16.mxu0 0
  %324 = vmatpush1.bf16.msra.mxu0 0
  %325 = vmatprep.subr.bf16.mxu0 0
  %326 = vmatpush1.bf16.msra.mxu0 0
  %327 = vmatprep.subr.bf16.mxu0 0
  %328 = vmatpush1.bf16.msra.mxu0 0
  %329 = vmatprep.mubr.bf16.mxu0 %v255
  %330 = vmatmul.mubr.bf16.gmra.mrb[0].mxu0 %v86
  %v331 = vpop.f32.mrb[0].mxu0
  %v332 = vadd.f32 %v292, %v331
  %v333 = vpop.f32.mrb[0].mxu0
  %v334 = vpop.f32.mrb[0].mxu0
  %v335 = vpop.f32.mrb[0].mxu0
  %336 = vdwg.mxu0
  %v337 = vmax.f32 %v332, 0.0
  %v338 = vpack.c.bf16 %v337, %v337
  %339 = vst [vmem:[%s3] sm:$0xf] %v338
  // Predicated region
  $region14: #{fast_scnn_forward.8} parent=0 // pred_check
    _
  $region15: #{fast_scnn_forward.8} parent=0 // pred_check_branch
    %341 = sbr.rel (0) target = $region17
  $region16: #{fast_scnn_forward.8} parent=0 // pred_region
    _
  $region17: #{fast_scnn_forward.8} parent=0 // pred_fallthru
    _
  // Predicated region
  $region18: #{fast_scnn_forward.8} parent=0 // pred_check
    _
  $region19: #{fast_scnn_forward.8} parent=0 // pred_check_branch
    %343 = sbr.rel (0) target = $region21
  $region20: #{fast_scnn_forward.8} parent=0 // pred_region
    _
  $region21: #{fast_scnn_forward.8} parent=0 // pred_fallthru
    _

// kernel: fast_scnn_forward.10
$region0: #{fast_scnn_forward.10}
  #allocation0 [shape = 'u32[]', space=smem, size = 0x4, offset = 0x4, fixed_abs, tag = 'smem constant byte address 0x4 - core index']
  #allocation1 [shape = 'u32[144,128]{1,0:T(1,128)}', space=vmem, size = 0x12000, scoped, tag = 'internal scratch']
  %s0 = inlined_call_operand.vmem [shape: bf16[8,128], index: 0, kind: input, shape index: {}]
  %s1 = inlined_call_operand.vmem [shape: bf16[128,128], index: 1, kind: input, shape index: {}]
  %s2 = inlined_call_operand.vmem [shape: f32[1,128], index: 2, kind: input, shape index: {}]
  %s3 = inlined_call_operand.vmem [shape: bf16[128,6], index: 3, kind: input, shape index: {}]
  %s4 = inlined_call_operand.vmem [shape: f32[1,6], index: 4, kind: input, shape index: {}]
  %s5 = inlined_call_operand.vmem [shape: bf16[8,6], index: 5, kind: output, shape index: {}]
  %s6 = sld [smem:[#allocation0]]
  $region30: #{fast_scnn_forward.10} parent=0
    _
  %s8 = ssub.s32 1, %s6
  %s9 = scalar_select 0, %s8, %s6
  // Predicated region
  $region2: #{fast_scnn_forward.10} parent=0 // pred_check
    _
  $region3: #{fast_scnn_forward.10} parent=0 // pred_check_branch
    %11 = sbr.rel (0) target = $region5
  $region4: #{fast_scnn_forward.10} parent=0 // pred_region
    _
  $region5: #{fast_scnn_forward.10} parent=0 // pred_fallthru
    _
  // Predicated region
  $region6: #{fast_scnn_forward.10} parent=0 // pred_check
    _
  $region7: #{fast_scnn_forward.10} parent=0 // pred_check_branch
    %13 = sbr.rel (0) target = $region9
  $region8: #{fast_scnn_forward.10} parent=0 // pred_region
    _
  $region9: #{fast_scnn_forward.10} parent=0 // pred_fallthru
    _
  // Predicated region
  $region10: #{fast_scnn_forward.10} parent=0 // pred_check
    _
  $region11: #{fast_scnn_forward.10} parent=0 // pred_check_branch
    %15 = sbr.rel (0) target = $region13
  $region12: #{fast_scnn_forward.10} parent=0 // pred_region
    _
  $region13: #{fast_scnn_forward.10} parent=0 // pred_fallthru
    _
  // Predicated region
  $region14: #{fast_scnn_forward.10} parent=0 // pred_check
    _
  $region15: #{fast_scnn_forward.10} parent=0 // pred_check_branch
    %17 = sbr.rel (0) target = $region17
  $region16: #{fast_scnn_forward.10} parent=0 // pred_region
    _
  $region17: #{fast_scnn_forward.10} parent=0 // pred_fallthru
    _
  // Predicated region
  $region18: #{fast_scnn_forward.10} parent=0 // pred_check
    _
  $region19: #{fast_scnn_forward.10} parent=0 // pred_check_branch
    %19 = sbr.rel (0) target = $region21
  $region20: #{fast_scnn_forward.10} parent=0 // pred_region
    _
  $region21: #{fast_scnn_forward.10} parent=0 // pred_fallthru
    _
  %v21 = vld [vmem:[%s0] sm:$0xf]
  %v22 = vld [vmem:[%s1] sm:$0xf]
  %v23 = vld [vmem:[%s1 + $0x4] sm:$0xf]
  %v24 = vld [vmem:[%s1 + $0x8] sm:$0xf]
  %v25 = vld [vmem:[%s1 + $0xc] sm:$0xf]
  %v26 = vld [vmem:[%s1 + $0x10] sm:$0xf]
  %v27 = vld [vmem:[%s1 + $0x14] sm:$0xf]
  %v28 = vld [vmem:[%s1 + $0x18] sm:$0xf]
  %v29 = vld [vmem:[%s1 + $0x1c] sm:$0xf]
  %v30 = vld [vmem:[%s1 + $0x20] sm:$0xf]
  %v31 = vld [vmem:[%s1 + $0x24] sm:$0xf]
  %v32 = vld [vmem:[%s1 + $0x28] sm:$0xf]
  %v33 = vld [vmem:[%s1 + $0x2c] sm:$0xf]
  %v34 = vld [vmem:[%s1 + $0x30] sm:$0xf]
  %v35 = vld [vmem:[%s1 + $0x34] sm:$0xf]
  %v36 = vld [vmem:[%s1 + $0x38] sm:$0xf]
  %v37 = vld [vmem:[%s1 + $0x3c] sm:$0xf]
  %v38 = vld [vmem:[%s2] sm:$0x1]
  %v40 = vlaneseq
  %v41 = vshrl.u32 %v40, 7
  %v42 = vsub.s32 0, %v41
  %v43 = vrot.slane %v38, %v42
  %v61 = vunpack.c.l.b16 %v22
  %v62 = vunpack.c.l.b16 %v23
  %v63 = vunpack.c.l.b16 %v24
  %v64 = vunpack.c.l.b16 %v25
  %v65 = vunpack.c.l.b16 %v26
  %v66 = vunpack.c.l.b16 %v27
  %v67 = vunpack.c.l.b16 %v28
  %v68 = vunpack.c.l.b16 %v29
  %v69 = vunpack.c.l.b16 %v30
  %v70 = vunpack.c.l.b16 %v31
  %v71 = vunpack.c.l.b16 %v32
  %v72 = vunpack.c.l.b16 %v33
  %v73 = vunpack.c.l.b16 %v34
  %v74 = vunpack.c.l.b16 %v35
  %v75 = vunpack.c.l.b16 %v36
  %v76 = vunpack.c.l.b16 %v37
  %v77 = vpack.c.b16 %v62, %v61
  %v78 = vpack.c.b16 %v64, %v63
  %v79 = vpack.c.b16 %v66, %v65
  %v80 = vpack.c.b16 %v68, %v67
  %v81 = vpack.c.b16 %v70, %v69
  %v82 = vpack.c.b16 %v72, %v71
  %v83 = vpack.c.b16 %v74, %v73
  %v84 = vpack.c.b16 %v76, %v75
  %93 = vmatprep.subr.bf16.mxu0 0
  %94 = vmatpush1.bf16.msra.mxu0 %v77
  %95 = vmatprep.subr.bf16.mxu0 0
  %96 = vmatpush1.bf16.msra.mxu0 %v78
  %97 = vmatprep.subr.bf16.mxu0 0
  %98 = vmatpush1.bf16.msra.mxu0 %v79
  %99 = vmatprep.subr.bf16.mxu0 0
  %100 = vmatpush1.bf16.msra.mxu0 %v80
  %101 = vmatprep.subr.bf16.mxu0 0
  %102 = vmatpush1.bf16.msra.mxu0 %v81
  %103 = vmatprep.subr.bf16.mxu0 0
  %104 = vmatpush1.bf16.msra.mxu0 %v82
  %105 = vmatprep.subr.bf16.mxu0 0
  %106 = vmatpush1.bf16.msra.mxu0 %v83
  %107 = vmatprep.subr.bf16.mxu0 0
  %108 = vmatpush1.bf16.msra.mxu0 %v84
  %109 = vmatprep.subr.bf16.mxu0 0
  %110 = vmatpush1.bf16.msra.mxu0 0
  %111 = vmatprep.subr.bf16.mxu0 0
  %112 = vmatpush1.bf16.msra.mxu0 0
  %113 = vmatprep.subr.bf16.mxu0 0
  %114 = vmatpush1.bf16.msra.mxu0 0
  %115 = vmatprep.subr.bf16.mxu0 0
  %116 = vmatpush1.bf16.msra.mxu0 0
  %117 = vmatprep.subr.bf16.mxu0 0
  %118 = vmatpush1.bf16.msra.mxu0 0
  %119 = vmatprep.subr.bf16.mxu0 0
  %120 = vmatpush1.bf16.msra.mxu0 0
  %121 = vmatprep.subr.bf16.mxu0 0
  %122 = vmatpush1.bf16.msra.mxu0 0
  %123 = vmatprep.subr.bf16.mxu0 0
  %124 = vmatpush1.bf16.msra.mxu0 0
  %125 = vmatprep.mubr.bf16.mxu0 0
  %126 = vmatmul.mubr.bf16.gmra.mrb[0].mxu0 %v21
  %v127 = vpop.f32.mrb[0].mxu0
  %v128 = vadd.f32 %v43, %v127
  %v129 = vpop.f32.mrb[0].mxu0
  %v130 = vpop.f32.mrb[0].mxu0
  %v131 = vpop.f32.mrb[0].mxu0
  %132 = vdwg.mxu0
  %v133 = vmax.f32 %v128, 0.0
  %v134 = vpack.c.bf16 %v133, %v133
  %v135 = vld [vmem:[%s3] sm:$0xf]
  %v136 = vld [vmem:[%s3 + $0x4] sm:$0xf]
  %v137 = vld [vmem:[%s3 + $0x8] sm:$0xf]
  %v138 = vld [vmem:[%s3 + $0xc] sm:$0xf]
  %v139 = vld [vmem:[%s3 + $0x10] sm:$0xf]
  %v140 = vld [vmem:[%s3 + $0x14] sm:$0xf]
  %v141 = vld [vmem:[%s3 + $0x18] sm:$0xf]
  %v142 = vld [vmem:[%s3 + $0x1c] sm:$0xf]
  %v143 = vld [vmem:[%s3 + $0x20] sm:$0xf]
  %v144 = vld [vmem:[%s3 + $0x24] sm:$0xf]
  %v145 = vld [vmem:[%s3 + $0x28] sm:$0xf]
  %v146 = vld [vmem:[%s3 + $0x2c] sm:$0xf]
  %v147 = vld [vmem:[%s3 + $0x30] sm:$0xf]
  %v148 = vld [vmem:[%s3 + $0x34] sm:$0xf]
  %v149 = vld [vmem:[%s3 + $0x38] sm:$0xf]
  %v150 = vld [vmem:[%s3 + $0x3c] sm:$0xf]
  %v151 = vld [vmem:[%s4] sm:$0x1]
  %v153 = vlaneseq
  %v154 = vshrl.u32 %v153, 7
  %v155 = vsub.s32 0, %v154
  %v156 = vrot.slane %v151, %v155
  %v174 = vunpack.c.l.b16 %v135
  %v175 = vunpack.c.l.b16 %v136
  %v176 = vunpack.c.l.b16 %v137
  %v177 = vunpack.c.l.b16 %v138
  %v178 = vunpack.c.l.b16 %v139
  %v179 = vunpack.c.l.b16 %v140
  %v180 = vunpack.c.l.b16 %v141
  %v181 = vunpack.c.l.b16 %v142
  %v182 = vunpack.c.l.b16 %v143
  %v183 = vunpack.c.l.b16 %v144
  %v184 = vunpack.c.l.b16 %v145
  %v185 = vunpack.c.l.b16 %v146
  %v186 = vunpack.c.l.b16 %v147
  %v187 = vunpack.c.l.b16 %v148
  %v188 = vunpack.c.l.b16 %v149
  %v189 = vunpack.c.l.b16 %v150
  %v190 = vpack.c.b16 %v175, %v174
  %v191 = vpack.c.b16 %v177, %v176
  %v192 = vpack.c.b16 %v179, %v178
  %v193 = vpack.c.b16 %v181, %v180
  %v194 = vpack.c.b16 %v183, %v182
  %v195 = vpack.c.b16 %v185, %v184
  %v196 = vpack.c.b16 %v187, %v186
  %v197 = vpack.c.b16 %v189, %v188
  %206 = vmatprep.subr.bf16.mxu0 0
  %207 = vmatpush1.bf16.msra.mxu0 %v190
  %208 = vmatprep.subr.bf16.mxu0 0
  %209 = vmatpush1.bf16.msra.mxu0 %v191
  %210 = vmatprep.subr.bf16.mxu0 0
  %211 = vmatpush1.bf16.msra.mxu0 %v192
  %212 = vmatprep.subr.bf16.mxu0 0
  %213 = vmatpush1.bf16.msra.mxu0 %v193
  %214 = vmatprep.subr.bf16.mxu0 0
  %215 = vmatpush1.bf16.msra.mxu0 %v194
  %216 = vmatprep.subr.bf16.mxu0 0
  %217 = vmatpush1.bf16.msra.mxu0 %v195
  %218 = vmatprep.subr.bf16.mxu0 0
  %219 = vmatpush1.bf16.msra.mxu0 %v196
  %220 = vmatprep.subr.bf16.mxu0 0
  %221 = vmatpush1.bf16.msra.mxu0 %v197
  %222 = vmatprep.subr.bf16.mxu0 0
  %223 = vmatpush1.bf16.msra.mxu0 0
  %224 = vmatprep.subr.bf16.mxu0 0
  %225 = vmatpush1.bf16.msra.mxu0 0
  %226 = vmatprep.subr.bf16.mxu0 0
  %227 = vmatpush1.bf16.msra.mxu0 0
  %228 = vmatprep.subr.bf16.mxu0 0
  %229 = vmatpush1.bf16.msra.mxu0 0
  %230 = vmatprep.subr.bf16.mxu0 0
  %231 = vmatpush1.bf16.msra.mxu0 0
  %232 = vmatprep.subr.bf16.mxu0 0
  %233 = vmatpush1.bf16.msra.mxu0 0
  %234 = vmatprep.subr.bf16.mxu0 0
  %235 = vmatpush1.bf16.msra.mxu0 0
  %236 = vmatprep.subr.bf16.mxu0 0
  %237 = vmatpush1.bf16.msra.mxu0 0
  %238 = vmatprep.mubr.bf16.mxu0 0
  %239 = vmatmul.mubr.bf16.gmra.mrb[0].mxu0 %v134
  %v240 = vpop.f32.mrb[0].mxu0
  %v241 = vadd.f32 %v156, %v240
  %v242 = vpop.f32.mrb[0].mxu0
  %v243 = vpop.f32.mrb[0].mxu0
  %v244 = vpop.f32.mrb[0].mxu0
  %245 = vdwg.mxu0
  %v246 = vpack.c.bf16 %v241, %v241
  %vm247 = vcmask 44032
  %248 = vst.msk [vmem:[%s5] sm:$0xf] %vm247, %v246
  // Predicated region
  $region22: #{fast_scnn_forward.10} parent=0 // pred_check
    _
  $region23: #{fast_scnn_forward.10} parent=0 // pred_check_branch
    %250 = sbr.rel (0) target = $region25
  $region24: #{fast_scnn_forward.10} parent=0 // pred_region
    _
  $region25: #{fast_scnn_forward.10} parent=0 // pred_fallthru
    _
  // Predicated region
  $region26: #{fast_scnn_forward.10} parent=0 // pred_check
    _
  $region27: #{fast_scnn_forward.10} parent=0 // pred_check_branch
    %252 = sbr.rel (0) target = $region29
  $region28: #{fast_scnn_forward.10} parent=0 // pred_region
    _
  $region29: #{fast_scnn_forward.10} parent=0 // pred_fallthru
    _

// kernel: fast_scnn_forward.11
$region0: #{fast_scnn_forward.11}
  #allocation0 [shape = 'u32[]', space=smem, size = 0x4, offset = 0x4, fixed_abs, tag = 'smem constant byte address 0x4 - core index']
  #allocation1 [shape = 'u32[144,128]{1,0:T(1,128)}', space=vmem, size = 0x12000, scoped, tag = 'internal scratch']
  %s0 = inlined_call_operand.vmem [shape: f32[16,2], index: 0, kind: input, shape index: {}]
  %s1 = inlined_call_operand.vmem [shape: f32[2,16], index: 1, kind: input, shape index: {}]
  %s2 = inlined_call_operand.vmem [shape: bf16[2,6,2,2], index: 2, kind: input, shape index: {}]
  %s3 = inlined_call_operand.hbm [shape: f32[2,6,16,16], index: 3, kind: output, shape index: {}]
  %s4 = sld [smem:[#allocation0]]
  $region45: #{fast_scnn_forward.11} parent=0
    _
  %s6 = ssub.s32 1, %s4
  %s7 = scalar_select 0, %s6, %s4
  $region1: #{fast_scnn_forward.11} parent=0
    #allocation2 [shape = 'u8[16384]{0}', space=vmem, size = 0x4000, scoped, tag = 'output window, operand 0']
    #allocation3 [shape = 's32[2]{0}', space=sflag, size = 0x8, scoped, tag = 'scoped memory for fast_scnn_forward.11']
    %8 = vsyncpa [#allocation3], 0
    %s9 = scalar_lea.sflag [#allocation3], 1
    %10 = vsyncpa %s9, 0
    loop: start=0, step=1, limit=14
    $region2: #{fast_scnn_forward.11} parent=1 // loop_pre_header
      _
    $region3: #{fast_scnn_forward.11} parent=1 // loop_header
      %s12 = sphi 0, %s16
      %p13 = scmp.ge.s32.totalorder %s12, 14
      %s19 = sphi 0, %s31
      %s20 = sphi 0, %s27
      %s21 = sphi 0, %s19
      %s22 = sphi 0, %s20
      %s23 = sphi 0, %s21
      %s24 = sphi 0, %s22
      %s32 = sphi 0, %s32
      %s34 = sphi 0, %s32
      %s35 = sphi 0, %s34
      %s49 = sphi 0, %s35
      %s53 = sphi 0, %s53
      %s55 = sphi 0, %s53
      %s56 = sphi 0, %s55
      %s70 = sphi 0, %s56
      %s78 = sphi 0, %s80
      %s81 = sphi 0, %s78
      %s82 = sphi 0, %s81
      %s98 = sphi 0, %s82
      %s106 = sphi 0, %s108
      %s109 = sphi 0, %s106
      %s110 = sphi 0, %s109
      %s126 = sphi 0, %s110
    $region4: #{fast_scnn_forward.11} parent=1 // loop_header_branch
      %15 = sbr.rel (%p13) target = $region8
    $region5: #{fast_scnn_forward.11} parent=1 // loop_body
      %s17 = ssub.s32 %s12, 1
      %s18 = ssub.s32 %s12, 2
      %s25 = sadd.s32 1, %s20
      %p26 = scmp.ge.s32.totalorder %s25, 6
      %s27 = scalar_select %p26, 0, %s25
      %s28 = sadd.s32 1, %s19
      %s29 = scalar_select %p26, %s28, %s19
      %p30 = scmp.ge.s32.totalorder %s29, 2
      %s31 = scalar_select %p30, 0, %s29
      %s33 = sadd.s32 %s32, 1
      %p36 = scmp.eq.s32.totalorder %s12, 11
      %p37 = scmp.ne.s32.totalorder %s32, %s34
      %p38 = scmp.eq.s32.totalorder %s12, 0
      %p39 = por %p37, %p38
      %p40 = scmp.ne.s32.totalorder %s32, %s34
      %p41 = scmp.eq.s32.totalorder %s17, 11
      %p42 = por %p40, %p41
      %p43 = scmp.ne.s32.totalorder %s34, %s35
      %p44 = scmp.eq.s32.totalorder %s17, 0
      %p45 = por %p43, %p44
      %p46 = scmp.ne.s32.totalorder %s34, %s35
      %p47 = scmp.eq.s32.totalorder %s18, 11
      %p48 = por %p46, %p47
      %p50 = scmp.ne.s32.totalorder %s35, %s49
      %p51 = scmp.eq.s32.totalorder %s18, 0
      %p52 = por %p50, %p51
      %s54 = sadd.s32 %s53, 1
      %p57 = scmp.eq.s32.totalorder %s12, 11
      %p58 = scmp.ne.s32.totalorder %s53, %s55
      %p59 = scmp.eq.s32.totalorder %s12, 0
      %p60 = por %p58, %p59
      %p61 = scmp.ne.s32.totalorder %s53, %s55
      %p62 = scmp.eq.s32.totalorder %s17, 11
      %p63 = por %p61, %p62
      %p64 = scmp.ne.s32.totalorder %s55, %s56
      %p65 = scmp.eq.s32.totalorder %s17, 0
      %p66 = por %p64, %p65
      %p67 = scmp.ne.s32.totalorder %s55, %s56
      %p68 = scmp.eq.s32.totalorder %s18, 11
      %p69 = por %p67, %p68
      %p71 = scmp.ne.s32.totalorder %s56, %s70
      %p72 = scmp.eq.s32.totalorder %s18, 0
      %p73 = por %p71, %p72
      %s74 = ssub.s32 %s19, %s31
      %s75 = ssub.s32 %s20, %s27
      %s76 = sor.u32 %s74, %s75
      %p77 = scmp.eq.s32.totalorder %s76, 0
      %s79 = sadd.s32 %s78, 1
      %s80 = scalar_select %p77, %s78, %s79
      %p83 = pneg %p77
      %p84 = scmp.eq.s32.totalorder %s12, 11
      %p85 = por %p83, %p84
      %p86 = scmp.ne.s32.totalorder %s78, %s81
      %p87 = scmp.eq.s32.totalorder %s12, 0
      %p88 = por %p86, %p87
      %p89 = scmp.ne.s32.totalorder %s78, %s81
      %p90 = scmp.eq.s32.totalorder %s17, 11
      %p91 = por %p89, %p90
      %p92 = scmp.ne.s32.totalorder %s81, %s82
      %p93 = scmp.eq.s32.totalorder %s17, 0
      %p94 = por %p92, %p93
      %p95 = scmp.ne.s32.totalorder %s81, %s82
      %p96 = scmp.eq.s32.totalorder %s18, 11
      %p97 = por %p95, %p96
      %p99 = scmp.ne.s32.totalorder %s82, %s98
      %p100 = scmp.eq.s32.totalorder %s18, 0
      %p101 = por %p99, %p100
      %s102 = ssub.s32 %s19, %s31
      %s103 = ssub.s32 %s20, %s27
      %s104 = sor.u32 %s102, %s103
      %p105 = scmp.eq.s32.totalorder %s104, 0
      %s107 = sadd.s32 %s106, 1
      %s108 = scalar_select %p105, %s106, %s107
      %p111 = pneg %p105
      %p112 = scmp.eq.s32.totalorder %s12, 11
      %p113 = por %p111, %p112
      %p114 = scmp.ne.s32.totalorder %s106, %s109
      %p115 = scmp.eq.s32.totalorder %s12, 0
      %p116 = por %p114, %p115
      %p117 = scmp.ne.s32.totalorder %s106, %s109
      %p118 = scmp.eq.s32.totalorder %s17, 11
      %p119 = por %p117, %p118
      %p120 = scmp.ne.s32.totalorder %s109, %s110
      %p121 = scmp.eq.s32.totalorder %s17, 0
      %p122 = por %p120, %p121
      %p123 = scmp.ne.s32.totalorder %s109, %s110
      %p124 = scmp.eq.s32.totalorder %s18, 11
      %p125 = por %p123, %p124
      %p127 = scmp.ne.s32.totalorder %s110, %s126
      %p128 = scmp.eq.s32.totalorder %s18, 0
      %p129 = por %p127, %p128
      %p130 = scmp.le.s32.totalorder 1, %s12
      %p131 = scmp.lt.s32.totalorder %s12, 13
      %p132 = pnand %p130, %p131
      %p133 = pneg %p132
      // Predicated region
      $region9: #{fast_scnn_forward.11} parent=5 // pred_check
        _
      $region10: #{fast_scnn_forward.11} parent=5 // pred_check_branch
        %135 = sbr.rel (%p132) target = $region12
      $region11: #{fast_scnn_forward.11} parent=5 // pred_region
        %s136 = ssub.s32 %s12, 1
        // Predicated region
        $region13: #{fast_scnn_forward.11} parent=11 // pred_check
          %p137 = pneg %p45
        $region14: #{fast_scnn_forward.11} parent=11 // pred_check_branch
          %139 = sbr.rel (%p137) target = $region16
        $region15: #{fast_scnn_forward.11} parent=11 // pred_region
          _
        $region16: #{fast_scnn_forward.11} parent=11 // pred_fallthru
          _
        // Predicated region
        $region17: #{fast_scnn_forward.11} parent=11 // pred_check
          %p140 = pneg %p66
        $region18: #{fast_scnn_forward.11} parent=11 // pred_check_branch
          %142 = sbr.rel (%p140) target = $region20
        $region19: #{fast_scnn_forward.11} parent=11 // pred_region
          _
        $region20: #{fast_scnn_forward.11} parent=11 // pred_fallthru
          _
      $region12: #{fast_scnn_forward.11} parent=5 // pred_fallthru
        _
      %p143 = scmp.lt.s32.totalorder %s12, 12
      // Predicated region
      $region21: #{fast_scnn_forward.11} parent=5 // pred_check
        %p144 = pneg %p143
      $region22: #{fast_scnn_forward.11} parent=5 // pred_check_branch
        %146 = sbr.rel (%p144) target = $region24
      $region23: #{fast_scnn_forward.11} parent=5 // pred_region
        // Predicated region
        $region25: #{fast_scnn_forward.11} parent=23 // pred_check
          %p147 = pneg %p88
        $region26: #{fast_scnn_forward.11} parent=23 // pred_check_branch
          %149 = sbr.rel (%p147) target = $region28
        $region27: #{fast_scnn_forward.11} parent=23 // pred_region
          %p150 = scmp.lt.s32.totalorder %s19, 1
          %s151 = scalar_select %p150, %s19, 1
          %p152 = scmp.lt.s32.totalorder %s20, 5
          %s153 = scalar_select %p152, %s20, 5
          %s154 = smul.addr %s151, 6
          %s155 = sadd.s32 %s153, %s154
          %s156 = scalar_lea.vmem %s2, %s155
        $region28: #{fast_scnn_forward.11} parent=23 // pred_fallthru
          _
      $region24: #{fast_scnn_forward.11} parent=5 // pred_fallthru
        _
      %p157 = scmp.le.s32.totalorder 1, %s12
      %p158 = scmp.lt.s32.totalorder %s12, 13
      %p159 = pnand %p157, %p158
      %p160 = pneg %p159
      // Predicated region
      $region29: #{fast_scnn_forward.11} parent=5 // pred_check
        _
      $region30: #{fast_scnn_forward.11} parent=5 // pred_check_branch
        %162 = sbr.rel (%p159) target = $region32
      $region31: #{fast_scnn_forward.11} parent=5 // pred_region
        %s163 = ssub.s32 %s12, 1
        %p164 = pneg %p45
        %p165 = pneg %p42
        %p166 = pneg %p66
        %p167 = pneg %p63
        %p168 = scmp.lt.s32.totalorder %s21, 1
        %s169 = scalar_select %p168, %s21, 1
        %p170 = scmp.lt.s32.totalorder %s22, 5
        %s171 = scalar_select %p170, %s22, 5
        %s172 = smul.addr %s169, 6
        %s173 = sadd.s32 %s171, %s172
        %s174 = scalar_lea.vmem %s2, %s173
        %p175 = pneg %p94
        %p176 = pneg %p91
        %p177 = pneg %p122
        %p178 = pneg %p119
        %s179 = sand.u32 %s109, 1
        %s180 = scalar_lea.sflag [#allocation3], %s179
        %s181 = sand.u32 %s109, 1
        %s182 = smul.addr %s181, 16
        %s183 = scalar_lea.vmem [#allocation2], %s182
        %p184 = scmp.lt.s32.totalorder %s21, 1
        %s185 = scalar_select %p184, %s21, 1
        %p186 = scmp.lt.s32.totalorder %s22, 5
        %s187 = scalar_select %p186, %s22, 5
        %s188 = smul.addr %s185, 6
        %s189 = sadd.s32 %s187, %s188
        %s190 = scalar_lea.vmem %s2, %s189
        %v191 = vld [vmem:[%s190] sm:$0x1]
        %v192 = vunpack.c.l.bf16 %v191
        %v193 = vld [vmem:[%s1] sm:$0x3]
        %vm194 = vcmask 15360
        %v196 = vsel %vm194, %v192, 0
        %vm198 = vcmask 1041408
        %v200 = vsel %vm198, %v193, 0
        %202 = vmatprep.subr.mxu0 0.0
        %203 = vmatpush1.msra.mxu0 %v200
        %204 = vmatprep.subr.mxu0 0.0
        %205 = vmatpush1.msra.mxu0 0.0
        %206 = vmatprep.subr.mxu0 0.0
        %207 = vmatpush1.msra.mxu0 0.0
        %208 = vmatprep.subr.mxu0 0.0
        %209 = vmatpush1.msra.mxu0 0.0
        %210 = vmatprep.subr.mxu0 0.0
        %211 = vmatpush1.msra.mxu0 0.0
        %212 = vmatprep.subr.mxu0 0.0
        %213 = vmatpush1.msra.mxu0 0.0
        %214 = vmatprep.subr.mxu0 0.0
        %215 = vmatpush1.msra.mxu0 0.0
        %216 = vmatprep.subr.mxu0 0.0
        %217 = vmatpush1.msra.mxu0 0.0
        %218 = vmatprep.subr.mxu0 0.0
        %219 = vmatpush1.msra.mxu0 0.0
        %220 = vmatprep.subr.mxu0 0.0
        %221 = vmatpush1.msra.mxu0 0.0
        %222 = vmatprep.subr.mxu0 0.0
        %223 = vmatpush1.msra.mxu0 0.0
        %224 = vmatprep.subr.mxu0 0.0
        %225 = vmatpush1.msra.mxu0 0.0
        %226 = vmatprep.subr.mxu0 0.0
        %227 = vmatpush1.msra.mxu0 0.0
        %228 = vmatprep.subr.mxu0 0.0
        %229 = vmatpush1.msra.mxu0 0.0
        %230 = vmatprep.subr.mxu0 0.0
        %231 = vmatpush1.msra.mxu0 0.0
        %232 = vmatprep.subr.mxu0 0.0
        %233 = vmatpush1.msra.mxu0 0.0
        %234 = vmatprep.subr.mxu0 0.0
        %235 = vmatpush1.msra.mxu0 0.0
        %236 = vmatprep.subr.mxu0 0.0
        %237 = vmatpush1.msra.mxu0 0.0
        %238 = vmatprep.subr.mxu0 0.0
        %239 = vmatpush1.msra.mxu0 0.0
        %240 = vmatprep.subr.mxu0 0.0
        %241 = vmatpush1.msra.mxu0 0.0
        %242 = vmatprep.subr.mxu0 0.0
        %243 = vmatpush1.msra.mxu0 0.0
        %244 = vmatprep.subr.mxu0 0.0
        %245 = vmatpush1.msra.mxu0 0.0
        %246 = vmatprep.subr.mxu0 0.0
        %247 = vmatpush1.msra.mxu0 0.0
        %248 = vmatprep.subr.mxu0 0.0
        %249 = vmatpush1.msra.mxu0 0.0
        %250 = vmatprep.subr.mxu0 0.0
        %251 = vmatpush1.msra.mxu0 0.0
        %252 = vmatprep.subr.mxu0 0.0
        %253 = vmatpush1.msra.mxu0 0.0
        %254 = vmatprep.subr.mxu0 0.0
        %255 = vmatpush1.msra.mxu0 0.0
        %256 = vmatprep.subr.mxu0 0.0
        %257 = vmatpush1.msra.mxu0 0.0
        %258 = vmatprep.subr.mxu0 0.0
        %259 = vmatpush1.msra.mxu0 0.0
        %260 = vmatprep.subr.mxu0 0.0
        %261 = vmatpush1.msra.mxu0 0.0
        %262 = vmatprep.subr.mxu0 0.0
        %263 = vmatpush1.msra.mxu0 0.0
        %264 = vmatprep.subr.mxu0 0.0
        %265 = vmatpush1.msra.mxu0 0.0
        %266 = vmatprep.mubr.f32.mxu0 0.0
        %267 = vmatmul.mubr.f32.gmra.mrb[0].mxu0 %v196
        %v268 = vpop.f32.mrb[0].mxu0
        %v269 = vadd.f32 0.0, %v268
        %v270 = vpop.f32.mrb[0].mxu0
        %271 = vdwg.mxu0
        %v272 = vld [vmem:[%s0] sm:$0xff]
        %v273 = vld [vmem:[%s0 + $0x8] sm:$0xff]
        %v275 = vsel %vm194, %v272, 0
        %v278 = vsel %vm194, %v273, 0
        %v281 = vsel %vm198, %v269, 0
        %283 = vmatprep.subr.mxu0 0.0
        %284 = vmatpush1.msra.mxu0 %v281
        %285 = vmatprep.subr.mxu0 0.0
        %286 = vmatpush1.msra.mxu0 0.0
        %287 = vmatprep.subr.mxu0 0.0
        %288 = vmatpush1.msra.mxu0 0.0
        %289 = vmatprep.subr.mxu0 0.0
        %290 = vmatpush1.msra.mxu0 0.0
        %291 = vmatprep.subr.mxu0 0.0
        %292 = vmatpush1.msra.mxu0 0.0
        %293 = vmatprep.subr.mxu0 0.0
        %294 = vmatpush1.msra.mxu0 0.0
        %295 = vmatprep.subr.mxu0 0.0
        %296 = vmatpush1.msra.mxu0 0.0
        %297 = vmatprep.subr.mxu0 0.0
        %298 = vmatpush1.msra.mxu0 0.0
        %299 = vmatprep.subr.mxu0 0.0
        %300 = vmatpush1.msra.mxu0 0.0
        %301 = vmatprep.subr.mxu0 0.0
        %302 = vmatpush1.msra.mxu0 0.0
        %303 = vmatprep.subr.mxu0 0.0
        %304 = vmatpush1.msra.mxu0 0.0
        %305 = vmatprep.subr.mxu0 0.0
        %306 = vmatpush1.msra.mxu0 0.0
        %307 = vmatprep.subr.mxu0 0.0
        %308 = vmatpush1.msra.mxu0 0.0
        %309 = vmatprep.subr.mxu0 0.0
        %310 = vmatpush1.msra.mxu0 0.0
        %311 = vmatprep.subr.mxu0 0.0
        %312 = vmatpush1.msra.mxu0 0.0
        %313 = vmatprep.subr.mxu0 0.0
        %314 = vmatpush1.msra.mxu0 0.0
        %315 = vmatprep.subr.mxu0 0.0
        %316 = vmatpush1.msra.mxu0 0.0
        %317 = vmatprep.subr.mxu0 0.0
        %318 = vmatpush1.msra.mxu0 0.0
        %319 = vmatprep.subr.mxu0 0.0
        %320 = vmatpush1.msra.mxu0 0.0
        %321 = vmatprep.subr.mxu0 0.0
        %322 = vmatpush1.msra.mxu0 0.0
        %323 = vmatprep.subr.mxu0 0.0
        %324 = vmatpush1.msra.mxu0 0.0
        %325 = vmatprep.subr.mxu0 0.0
        %326 = vmatpush1.msra.mxu0 0.0
        %327 = vmatprep.subr.mxu0 0.0
        %328 = vmatpush1.msra.mxu0 0.0
        %329 = vmatprep.subr.mxu0 0.0
        %330 = vmatpush1.msra.mxu0 0.0
        %331 = vmatprep.subr.mxu0 0.0
        %332 = vmatpush1.msra.mxu0 0.0
        %333 = vmatprep.subr.mxu0 0.0
        %334 = vmatpush1.msra.mxu0 0.0
        %335 = vmatprep.subr.mxu0 0.0
        %336 = vmatpush1.msra.mxu0 0.0
        %337 = vmatprep.subr.mxu0 0.0
        %338 = vmatpush1.msra.mxu0 0.0
        %339 = vmatprep.subr.mxu0 0.0
        %340 = vmatpush1.msra.mxu0 0.0
        %341 = vmatprep.subr.mxu0 0.0
        %342 = vmatpush1.msra.mxu0 0.0
        %343 = vmatprep.subr.mxu0 0.0
        %344 = vmatpush1.msra.mxu0 0.0
        %345 = vmatprep.subr.mxu0 0.0
        %346 = vmatpush1.msra.mxu0 0.0
        %347 = vmatprep.mubr.f32.mxu0 0.0
        %348 = vmatmul.mubr.f32.gmra.mrb[0].mxu0 %v275
        %v349 = vpop.f32.mrb[0].mxu0
        %v350 = vadd.f32 0.0, %v349
        %v351 = vpop.f32.mrb[0].mxu0
        %352 = vmatprep.mubr.f32.mxu0 0.0
        %353 = vmatmul.mubr.f32.gmra.mrb[0].mxu0 %v278
        %v354 = vpop.f32.mrb[0].mxu0
        %v355 = vadd.f32 0.0, %v354
        %v356 = vpop.f32.mrb[0].mxu0
        %357 = vdwg.mxu0
        %vm358 = vcmask 130048
        %359 = vst.msk [vmem:[%s183] sm:$0xff] %vm358, %v350
        %360 = vst.msk [vmem:[%s183 + $0x8] sm:$0xff] %vm358, %v355
        %s361 = sand.u32 %s109, 1
        %s362 = scalar_lea.sflag [#allocation3], %s361
        %s363 = sand.u32 %s109, 1
        %s364 = smul.addr %s363, 16
        %s365 = scalar_lea.vmem [#allocation2], %s364
        // Predicated region
        $region33: #{fast_scnn_forward.11} parent=31 // pred_check
          %p366 = pneg %p119
        $region34: #{fast_scnn_forward.11} parent=31 // pred_check_branch
          %368 = sbr.rel (%p366) target = $region36
        $region35: #{fast_scnn_forward.11} parent=31 // pred_region
          %s370 = ssub.s32 256, 256
          %371 = vsyncadd %s362, %s370
          %s372 = smul.addr %s22, 2
          %s373 = smul.addr %s21, 12
          %s374 = sadd.s32 %s372, %s373
          %s375 = smul.addr %s374, 128
          %s376 = scalar_lea.hbm %s3, %s375
          %s377 = sshll.u32 %s365, 4
          %s378 = int_to_ptr.vmem [resolvable:$true] %s377
          %383 = dma.vmem_to_hbm [thread:$0]  %s378, 256, %s376, %s362, 128, 128, 8
        $region36: #{fast_scnn_forward.11} parent=31 // pred_fallthru
          _
      $region32: #{fast_scnn_forward.11} parent=5 // pred_fallthru
        _
      %p384 = scmp.le.s32.totalorder 2, %s12
      // Predicated region
      $region37: #{fast_scnn_forward.11} parent=5 // pred_check
        %p385 = pneg %p384
      $region38: #{fast_scnn_forward.11} parent=5 // pred_check_branch
        %387 = sbr.rel (%p385) target = $region40
      $region39: #{fast_scnn_forward.11} parent=5 // pred_region
        %s388 = ssub.s32 %s12, 2
        // Predicated region
        $region41: #{fast_scnn_forward.11} parent=39 // pred_check
          %p389 = pneg %p125
        $region42: #{fast_scnn_forward.11} parent=39 // pred_check_branch
          %391 = sbr.rel (%p389) target = $region44
        $region43: #{fast_scnn_forward.11} parent=39 // pred_region
          %s392 = sand.u32 %s110, 1
          %s393 = scalar_lea.sflag [#allocation3], %s392
          %s394 = sand.u32 %s110, 1
          %s395 = smul.addr %s394, 16
          %s396 = scalar_lea.vmem [#allocation2], %s395
          %397 = dma.done %s393, 256
        $region44: #{fast_scnn_forward.11} parent=39 // pred_fallthru
          _
      $region40: #{fast_scnn_forward.11} parent=5 // pred_fallthru
        _
    $region6: #{fast_scnn_forward.11} parent=1 // loop_footer
      %s16 = sadd.s32 1, %s12
    $region7: #{fast_scnn_forward.11} parent=1 // loop_footer_branch
      %11 = sbr.rel target = $region3
    $region8: #{fast_scnn_forward.11} parent=1 // loop_exit
      _
    %398 = vsyncpa [#allocation3], 1
    %s399 = scalar_lea.sflag [#allocation3], 1
    %400 = vsyncpa %s399, 1

// kernel: fast_scnn_forward.9
$region0: #{fast_scnn_forward.9}
  #allocation0 [shape = 'u32[]', space=smem, size = 0x4, offset = 0x4, fixed_abs, tag = 'smem constant byte address 0x4 - core index']
  #allocation1 [shape = 'u32[144,128]{1,0:T(1,128)}', space=vmem, size = 0x12000, scoped, tag = 'internal scratch']
  %s0 = inlined_call_operand.vmem [shape: bf16[8,1152], index: 0, kind: input, shape index: {}]
  %s1 = inlined_call_operand.vmem [shape: bf16[1152,128], index: 1, kind: input, shape index: {}]
  %s2 = inlined_call_operand.vmem [shape: f32[1,128], index: 2, kind: input, shape index: {}]
  %s3 = inlined_call_operand.vmem [shape: bf16[8,128], index: 3, kind: output, shape index: {}]
  %s4 = sld [smem:[#allocation0]]
  $region22: #{fast_scnn_forward.9} parent=0
    _
  %s6 = ssub.s32 1, %s4
  %s7 = scalar_select 0, %s6, %s4
  // Predicated region
  $region2: #{fast_scnn_forward.9} parent=0 // pred_check
    _
  $region3: #{fast_scnn_forward.9} parent=0 // pred_check_branch
    %9 = sbr.rel (0) target = $region5
  $region4: #{fast_scnn_forward.9} parent=0 // pred_region
    _
  $region5: #{fast_scnn_forward.9} parent=0 // pred_fallthru
    _
  // Predicated region
  $region6: #{fast_scnn_forward.9} parent=0 // pred_check
    _
  $region7: #{fast_scnn_forward.9} parent=0 // pred_check_branch
    %11 = sbr.rel (0) target = $region9
  $region8: #{fast_scnn_forward.9} parent=0 // pred_region
    _
  $region9: #{fast_scnn_forward.9} parent=0 // pred_fallthru
    _
  // Predicated region
  $region10: #{fast_scnn_forward.9} parent=0 // pred_check
    _
  $region11: #{fast_scnn_forward.9} parent=0 // pred_check_branch
    %13 = sbr.rel (0) target = $region13
  $region12: #{fast_scnn_forward.9} parent=0 // pred_region
    _
  $region13: #{fast_scnn_forward.9} parent=0 // pred_fallthru
    _
  %v15 = vld [vmem:[%s0] sm:$0xff]
  %v16 = vld [vmem:[%s0 + $0x8] sm:$0xff]
  %v17 = vld [vmem:[%s0 + $0x10] sm:$0xff]
  %v18 = vld [vmem:[%s0 + $0x18] sm:$0xff]
  %v19 = vld [vmem:[%s0 + $0x20] sm:$0xf]
  %v20 = vld [vmem:[%s1] sm:$0xf]
  %v21 = vld [vmem:[%s1 + $0x4] sm:$0xf]
  %v22 = vld [vmem:[%s1 + $0x8] sm:$0xf]
  %v23 = vld [vmem:[%s1 + $0xc] sm:$0xf]
  %v24 = vld [vmem:[%s1 + $0x10] sm:$0xf]
  %v25 = vld [vmem:[%s1 + $0x14] sm:$0xf]
  %v26 = vld [vmem:[%s1 + $0x18] sm:$0xf]
  %v27 = vld [vmem:[%s1 + $0x1c] sm:$0xf]
  %v28 = vld [vmem:[%s1 + $0x20] sm:$0xf]
  %v29 = vld [vmem:[%s1 + $0x24] sm:$0xf]
  %v30 = vld [vmem:[%s1 + $0x28] sm:$0xf]
  %v31 = vld [vmem:[%s1 + $0x2c] sm:$0xf]
  %v32 = vld [vmem:[%s1 + $0x30] sm:$0xf]
  %v33 = vld [vmem:[%s1 + $0x34] sm:$0xf]
  %v34 = vld [vmem:[%s1 + $0x38] sm:$0xf]
  %v35 = vld [vmem:[%s1 + $0x3c] sm:$0xf]
  %v36 = vld [vmem:[%s1 + $0x40] sm:$0xf]
  %v37 = vld [vmem:[%s1 + $0x44] sm:$0xf]
  %v38 = vld [vmem:[%s1 + $0x48] sm:$0xf]
  %v39 = vld [vmem:[%s1 + $0x4c] sm:$0xf]
  %v40 = vld [vmem:[%s1 + $0x50] sm:$0xf]
  %v41 = vld [vmem:[%s1 + $0x54] sm:$0xf]
  %v42 = vld [vmem:[%s1 + $0x58] sm:$0xf]
  %v43 = vld [vmem:[%s1 + $0x5c] sm:$0xf]
  %v44 = vld [vmem:[%s1 + $0x60] sm:$0xf]
  %v45 = vld [vmem:[%s1 + $0x64] sm:$0xf]
  %v46 = vld [vmem:[%s1 + $0x68] sm:$0xf]
  %v47 = vld [vmem:[%s1 + $0x6c] sm:$0xf]
  %v48 = vld [vmem:[%s1 + $0x70] sm:$0xf]
  %v49 = vld [vmem:[%s1 + $0x74] sm:$0xf]
  %v50 = vld [vmem:[%s1 + $0x78] sm:$0xf]
  %v51 = vld [vmem:[%s1 + $0x7c] sm:$0xf]
  %v52 = vld [vmem:[%s1 + $0x80] sm:$0xf]
  %v53 = vld [vmem:[%s1 + $0x84] sm:$0xf]
  %v54 = vld [vmem:[%s1 + $0x88] sm:$0xf]
  %v55 = vld [vmem:[%s1 + $0x8c] sm:$0xf]
  %v56 = vld [vmem:[%s1 + $0x90] sm:$0xf]
  %v57 = vld [vmem:[%s1 + $0x94] sm:$0xf]
  %v58 = vld [vmem:[%s1 + $0x98] sm:$0xf]
  %v59 = vld [vmem:[%s1 + $0x9c] sm:$0xf]
  %v60 = vld [vmem:[%s1 + $0xa0] sm:$0xf]
  %v61 = vld [vmem:[%s1 + $0xa4] sm:$0xf]
  %v62 = vld [vmem:[%s1 + $0xa8] sm:$0xf]
  %v63 = vld [vmem:[%s1 + $0xac] sm:$0xf]
  %v64 = vld [vmem:[%s1 + $0xb0] sm:$0xf]
  %v65 = vld [vmem:[%s1 + $0xb4] sm:$0xf]
  %v66 = vld [vmem:[%s1 + $0xb8] sm:$0xf]
  %v67 = vld [vmem:[%s1 + $0xbc] sm:$0xf]
  %v68 = vld [vmem:[%s1 + $0xc0] sm:$0xf]
  %v69 = vld [vmem:[%s1 + $0xc4] sm:$0xf]
  %v70 = vld [vmem:[%s1 + $0xc8] sm:$0xf]
  %v71 = vld [vmem:[%s1 + $0xcc] sm:$0xf]
  %v72 = vld [vmem:[%s1 + $0xd0] sm:$0xf]
  %v73 = vld [vmem:[%s1 + $0xd4] sm:$0xf]
  %v74 = vld [vmem:[%s1 + $0xd8] sm:$0xf]
  %v75 = vld [vmem:[%s1 + $0xdc] sm:$0xf]
  %v76 = vld [vmem:[%s1 + $0xe0] sm:$0xf]
  %v77 = vld [vmem:[%s1 + $0xe4] sm:$0xf]
  %v78 = vld [vmem:[%s1 + $0xe8] sm:$0xf]
  %v79 = vld [vmem:[%s1 + $0xec] sm:$0xf]
  %v80 = vld [vmem:[%s1 + $0xf0] sm:$0xf]
  %v81 = vld [vmem:[%s1 + $0xf4] sm:$0xf]
  %v82 = vld [vmem:[%s1 + $0xf8] sm:$0xf]
  %v83 = vld [vmem:[%s1 + $0xfc] sm:$0xf]
  %v84 = vld [vmem:[%s1 + $0x100] sm:$0xf]
  %v85 = vld [vmem:[%s1 + $0x104] sm:$0xf]
  %v86 = vld [vmem:[%s1 + $0x108] sm:$0xf]
  %v87 = vld [vmem:[%s1 + $0x10c] sm:$0xf]
  %v88 = vld [vmem:[%s1 + $0x110] sm:$0xf]
  %v89 = vld [vmem:[%s1 + $0x114] sm:$0xf]
  %v90 = vld [vmem:[%s1 + $0x118] sm:$0xf]
  %v91 = vld [vmem:[%s1 + $0x11c] sm:$0xf]
  %v92 = vld [vmem:[%s1 + $0x120] sm:$0xf]
  %v93 = vld [vmem:[%s1 + $0x124] sm:$0xf]
  %v94 = vld [vmem:[%s1 + $0x128] sm:$0xf]
  %v95 = vld [vmem:[%s1 + $0x12c] sm:$0xf]
  %v96 = vld [vmem:[%s1 + $0x130] sm:$0xf]
  %v97 = vld [vmem:[%s1 + $0x134] sm:$0xf]
  %v98 = vld [vmem:[%s1 + $0x138] sm:$0xf]
  %v99 = vld [vmem:[%s1 + $0x13c] sm:$0xf]
  %v100 = vld [vmem:[%s1 + $0x140] sm:$0xf]
  %v101 = vld [vmem:[%s1 + $0x144] sm:$0xf]
  %v102 = vld [vmem:[%s1 + $0x148] sm:$0xf]
  %v103 = vld [vmem:[%s1 + $0x14c] sm:$0xf]
  %v104 = vld [vmem:[%s1 + $0x150] sm:$0xf]
  %v105 = vld [vmem:[%s1 + $0x154] sm:$0xf]
  %v106 = vld [vmem:[%s1 + $0x158] sm:$0xf]
  %v107 = vld [vmem:[%s1 + $0x15c] sm:$0xf]
  %v108 = vld [vmem:[%s1 + $0x160] sm:$0xf]
  %v109 = vld [vmem:[%s1 + $0x164] sm:$0xf]
  %v110 = vld [vmem:[%s1 + $0x168] sm:$0xf]
  %v111 = vld [vmem:[%s1 + $0x16c] sm:$0xf]
  %v112 = vld [vmem:[%s1 + $0x170] sm:$0xf]
  %v113 = vld [vmem:[%s1 + $0x174] sm:$0xf]
  %v114 = vld [vmem:[%s1 + $0x178] sm:$0xf]
  %v115 = vld [vmem:[%s1 + $0x17c] sm:$0xf]
  %v116 = vld [vmem:[%s1 + $0x180] sm:$0xf]
  %v117 = vld [vmem:[%s1 + $0x184] sm:$0xf]
  %v118 = vld [vmem:[%s1 + $0x188] sm:$0xf]
  %v119 = vld [vmem:[%s1 + $0x18c] sm:$0xf]
  %v120 = vld [vmem:[%s1 + $0x190] sm:$0xf]
  %v121 = vld [vmem:[%s1 + $0x194] sm:$0xf]
  %v122 = vld [vmem:[%s1 + $0x198] sm:$0xf]
  %v123 = vld [vmem:[%s1 + $0x19c] sm:$0xf]
  %v124 = vld [vmem:[%s1 + $0x1a0] sm:$0xf]
  %v125 = vld [vmem:[%s1 + $0x1a4] sm:$0xf]
  %v126 = vld [vmem:[%s1 + $0x1a8] sm:$0xf]
  %v127 = vld [vmem:[%s1 + $0x1ac] sm:$0xf]
  %v128 = vld [vmem:[%s1 + $0x1b0] sm:$0xf]
  %v129 = vld [vmem:[%s1 + $0x1b4] sm:$0xf]
  %v130 = vld [vmem:[%s1 + $0x1b8] sm:$0xf]
  %v131 = vld [vmem:[%s1 + $0x1bc] sm:$0xf]
  %v132 = vld [vmem:[%s1 + $0x1c0] sm:$0xf]
  %v133 = vld [vmem:[%s1 + $0x1c4] sm:$0xf]
  %v134 = vld [vmem:[%s1 + $0x1c8] sm:$0xf]
  %v135 = vld [vmem:[%s1 + $0x1cc] sm:$0xf]
  %v136 = vld [vmem:[%s1 + $0x1d0] sm:$0xf]
  %v137 = vld [vmem:[%s1 + $0x1d4] sm:$0xf]
  %v138 = vld [vmem:[%s1 + $0x1d8] sm:$0xf]
  %v139 = vld [vmem:[%s1 + $0x1dc] sm:$0xf]
  %v140 = vld [vmem:[%s1 + $0x1e0] sm:$0xf]
  %v141 = vld [vmem:[%s1 + $0x1e4] sm:$0xf]
  %v142 = vld [vmem:[%s1 + $0x1e8] sm:$0xf]
  %v143 = vld [vmem:[%s1 + $0x1ec] sm:$0xf]
  %v144 = vld [vmem:[%s1 + $0x1f0] sm:$0xf]
  %v145 = vld [vmem:[%s1 + $0x1f4] sm:$0xf]
  %v146 = vld [vmem:[%s1 + $0x1f8] sm:$0xf]
  %v147 = vld [vmem:[%s1 + $0x1fc] sm:$0xf]
  %v148 = vld [vmem:[%s1 + $0x200] sm:$0xf]
  %v149 = vld [vmem:[%s1 + $0x204] sm:$0xf]
  %v150 = vld [vmem:[%s1 + $0x208] sm:$0xf]
  %v151 = vld [vmem:[%s1 + $0x20c] sm:$0xf]
  %v152 = vld [vmem:[%s1 + $0x210] sm:$0xf]
  %v153 = vld [vmem:[%s1 + $0x214] sm:$0xf]
  %v154 = vld [vmem:[%s1 + $0x218] sm:$0xf]
  %v155 = vld [vmem:[%s1 + $0x21c] sm:$0xf]
  %v156 = vld [vmem:[%s1 + $0x220] sm:$0xf]
  %v157 = vld [vmem:[%s1 + $0x224] sm:$0xf]
  %v158 = vld [vmem:[%s1 + $0x228] sm:$0xf]
  %v159 = vld [vmem:[%s1 + $0x22c] sm:$0xf]
  %v160 = vld [vmem:[%s1 + $0x230] sm:$0xf]
  %v161 = vld [vmem:[%s1 + $0x234] sm:$0xf]
  %v162 = vld [vmem:[%s1 + $0x238] sm:$0xf]
  %v163 = vld [vmem:[%s1 + $0x23c] sm:$0xf]
  %v164 = vld [vmem:[%s2] sm:$0x1]
  %v166 = vlaneseq
  %v167 = vshrl.u32 %v166, 7
  %v168 = vsub.s32 0, %v167
  %v169 = vrot.slane %v164, %v168
  %v176 = vunpack.c.l.b16 %v15
  %v177 = vunpack.c.h.b16 %v15
  %v178 = vunpack.c.l.b16 %v16
  %v179 = vunpack.c.h.b16 %v16
  %v180 = vunpack.c.l.b16 %v17
  %v181 = vunpack.c.h.b16 %v17
  %v182 = vunpack.c.l.b16 %v18
  %v183 = vunpack.c.h.b16 %v18
  %v184 = vunpack.c.l.b16 %v19
  %v185 = vpack.c.b16 %v176, %v176
  %v186 = vpack.c.b16 %v177, %v177
  %v187 = vpack.c.b16 %v178, %v178
  %v188 = vpack.c.b16 %v179, %v179
  %v189 = vpack.c.b16 %v180, %v180
  %v190 = vpack.c.b16 %v181, %v181
  %v191 = vpack.c.b16 %v182, %v182
  %v192 = vpack.c.b16 %v183, %v183
  %v193 = vpack.c.b16 %v184, %v184
  %v347 = vunpack.c.l.b16 %v20
  %v348 = vunpack.c.l.b16 %v21
  %v349 = vunpack.c.l.b16 %v22
  %v350 = vunpack.c.l.b16 %v23
  %v351 = vunpack.c.l.b16 %v24
  %v352 = vunpack.c.l.b16 %v25
  %v353 = vunpack.c.l.b16 %v26
  %v354 = vunpack.c.l.b16 %v27
  %v355 = vunpack.c.l.b16 %v28
  %v356 = vunpack.c.l.b16 %v29
  %v357 = vunpack.c.l.b16 %v30
  %v358 = vunpack.c.l.b16 %v31
  %v359 = vunpack.c.l.b16 %v32
  %v360 = vunpack.c.l.b16 %v33
  %v361 = vunpack.c.l.b16 %v34
  %v362 = vunpack.c.l.b16 %v35
  %v363 = vunpack.c.l.b16 %v36
  %v364 = vunpack.c.l.b16 %v37
  %v365 = vunpack.c.l.b16 %v38
  %v366 = vunpack.c.l.b16 %v39
  %v367 = vunpack.c.l.b16 %v40
  %v368 = vunpack.c.l.b16 %v41
  %v369 = vunpack.c.l.b16 %v42
  %v370 = vunpack.c.l.b16 %v43
  %v371 = vunpack.c.l.b16 %v44
  %v372 = vunpack.c.l.b16 %v45
  %v373 = vunpack.c.l.b16 %v46
  %v374 = vunpack.c.l.b16 %v47
  %v375 = vunpack.c.l.b16 %v48
  %v376 = vunpack.c.l.b16 %v49
  %v377 = vunpack.c.l.b16 %v50
  %v378 = vunpack.c.l.b16 %v51
  %v379 = vunpack.c.l.b16 %v52
  %v380 = vunpack.c.l.b16 %v53
  %v381 = vunpack.c.l.b16 %v54
  %v382 = vunpack.c.l.b16 %v55
  %v383 = vunpack.c.l.b16 %v56
  %v384 = vunpack.c.l.b16 %v57
  %v385 = vunpack.c.l.b16 %v58
  %v386 = vunpack.c.l.b16 %v59
  %v387 = vunpack.c.l.b16 %v60
  %v388 = vunpack.c.l.b16 %v61
  %v389 = vunpack.c.l.b16 %v62
  %v390 = vunpack.c.l.b16 %v63
  %v391 = vunpack.c.l.b16 %v64
  %v392 = vunpack.c.l.b16 %v65
  %v393 = vunpack.c.l.b16 %v66
  %v394 = vunpack.c.l.b16 %v67
  %v395 = vunpack.c.l.b16 %v68
  %v396 = vunpack.c.l.b16 %v69
  %v397 = vunpack.c.l.b16 %v70
  %v398 = vunpack.c.l.b16 %v71
  %v399 = vunpack.c.l.b16 %v72
  %v400 = vunpack.c.l.b16 %v73
  %v401 = vunpack.c.l.b16 %v74
  %v402 = vunpack.c.l.b16 %v75
  %v403 = vunpack.c.l.b16 %v76
  %v404 = vunpack.c.l.b16 %v77
  %v405 = vunpack.c.l.b16 %v78
  %v406 = vunpack.c.l.b16 %v79
  %v407 = vunpack.c.l.b16 %v80
  %v408 = vunpack.c.l.b16 %v81
  %v409 = vunpack.c.l.b16 %v82
  %v410 = vunpack.c.l.b16 %v83
  %v411 = vunpack.c.l.b16 %v84
  %v412 = vunpack.c.l.b16 %v85
  %v413 = vunpack.c.l.b16 %v86
  %v414 = vunpack.c.l.b16 %v87
  %v415 = vunpack.c.l.b16 %v88
  %v416 = vunpack.c.l.b16 %v89
  %v417 = vunpack.c.l.b16 %v90
  %v418 = vunpack.c.l.b16 %v91
  %v419 = vunpack.c.l.b16 %v92
  %v420 = vunpack.c.l.b16 %v93
  %v421 = vunpack.c.l.b16 %v94
  %v422 = vunpack.c.l.b16 %v95
  %v423 = vunpack.c.l.b16 %v96
  %v424 = vunpack.c.l.b16 %v97
  %v425 = vunpack.c.l.b16 %v98
  %v426 = vunpack.c.l.b16 %v99
  %v427 = vunpack.c.l.b16 %v100
  %v428 = vunpack.c.l.b16 %v101
  %v429 = vunpack.c.l.b16 %v102
  %v430 = vunpack.c.l.b16 %v103
  %v431 = vunpack.c.l.b16 %v104
  %v432 = vunpack.c.l.b16 %v105
  %v433 = vunpack.c.l.b16 %v106
  %v434 = vunpack.c.l.b16 %v107
  %v435 = vunpack.c.l.b16 %v108
  %v436 = vunpack.c.l.b16 %v109
  %v437 = vunpack.c.l.b16 %v110
  %v438 = vunpack.c.l.b16 %v111
  %v439 = vunpack.c.l.b16 %v112
  %v440 = vunpack.c.l.b16 %v113
  %v441 = vunpack.c.l.b16 %v114
  %v442 = vunpack.c.l.b16 %v115
  %v443 = vunpack.c.l.b16 %v116
  %v444 = vunpack.c.l.b16 %v117
  %v445 = vunpack.c.l.b16 %v118
  %v446 = vunpack.c.l.b16 %v119
  %v447 = vunpack.c.l.b16 %v120
  %v448 = vunpack.c.l.b16 %v121
  %v449 = vunpack.c.l.b16 %v122
  %v450 = vunpack.c.l.b16 %v123
  %v451 = vunpack.c.l.b16 %v124
  %v452 = vunpack.c.l.b16 %v125
  %v453 = vunpack.c.l.b16 %v126
  %v454 = vunpack.c.l.b16 %v127
  %v455 = vunpack.c.l.b16 %v128
  %v456 = vunpack.c.l.b16 %v129
  %v457 = vunpack.c.l.b16 %v130
  %v458 = vunpack.c.l.b16 %v131
  %v459 = vunpack.c.l.b16 %v132
  %v460 = vunpack.c.l.b16 %v133
  %v461 = vunpack.c.l.b16 %v134
  %v462 = vunpack.c.l.b16 %v135
  %v463 = vunpack.c.l.b16 %v136
  %v464 = vunpack.c.l.b16 %v137
  %v465 = vunpack.c.l.b16 %v138
  %v466 = vunpack.c.l.b16 %v139
  %v467 = vunpack.c.l.b16 %v140
  %v468 = vunpack.c.l.b16 %v141
  %v469 = vunpack.c.l.b16 %v142
  %v470 = vunpack.c.l.b16 %v143
  %v471 = vunpack.c.l.b16 %v144
  %v472 = vunpack.c.l.b16 %v145
  %v473 = vunpack.c.l.b16 %v146
  %v474 = vunpack.c.l.b16 %v147
  %v475 = vunpack.c.l.b16 %v148
  %v476 = vunpack.c.l.b16 %v149
  %v477 = vunpack.c.l.b16 %v150
  %v478 = vunpack.c.l.b16 %v151
  %v479 = vunpack.c.l.b16 %v152
  %v480 = vunpack.c.l.b16 %v153
  %v481 = vunpack.c.l.b16 %v154
  %v482 = vunpack.c.l.b16 %v155
  %v483 = vunpack.c.l.b16 %v156
  %v484 = vunpack.c.l.b16 %v157
  %v485 = vunpack.c.l.b16 %v158
  %v486 = vunpack.c.l.b16 %v159
  %v487 = vunpack.c.l.b16 %v160
  %v488 = vunpack.c.l.b16 %v161
  %v489 = vunpack.c.l.b16 %v162
  %v490 = vunpack.c.l.b16 %v163
  %v491 = vpack.c.b16 %v348, %v347
  %v492 = vpack.c.b16 %v350, %v349
  %v493 = vpack.c.b16 %v352, %v351
  %v494 = vpack.c.b16 %v354, %v353
  %v495 = vpack.c.b16 %v356, %v355
  %v496 = vpack.c.b16 %v358, %v357
  %v497 = vpack.c.b16 %v360, %v359
  %v498 = vpack.c.b16 %v362, %v361
  %v499 = vpack.c.b16 %v364, %v363
  %v500 = vpack.c.b16 %v366, %v365
  %v501 = vpack.c.b16 %v368, %v367
  %v502 = vpack.c.b16 %v370, %v369
  %v503 = vpack.c.b16 %v372, %v371
  %v504 = vpack.c.b16 %v374, %v373
  %v505 = vpack.c.b16 %v376, %v375
  %v506 = vpack.c.b16 %v378, %v377
  %v507 = vpack.c.b16 %v380, %v379
  %v508 = vpack.c.b16 %v382, %v381
  %v509 = vpack.c.b16 %v384, %v383
  %v510 = vpack.c.b16 %v386, %v385
  %v511 = vpack.c.b16 %v388, %v387
  %v512 = vpack.c.b16 %v390, %v389
  %v513 = vpack.c.b16 %v392, %v391
  %v514 = vpack.c.b16 %v394, %v393
  %v515 = vpack.c.b16 %v396, %v395
  %v516 = vpack.c.b16 %v398, %v397
  %v517 = vpack.c.b16 %v400, %v399
  %v518 = vpack.c.b16 %v402, %v401
  %v519 = vpack.c.b16 %v404, %v403
  %v520 = vpack.c.b16 %v406, %v405
  %v521 = vpack.c.b16 %v408, %v407
  %v522 = vpack.c.b16 %v410, %v409
  %v523 = vpack.c.b16 %v412, %v411
  %v524 = vpack.c.b16 %v414, %v413
  %v525 = vpack.c.b16 %v416, %v415
  %v526 = vpack.c.b16 %v418, %v417
  %v527 = vpack.c.b16 %v420, %v419
  %v528 = vpack.c.b16 %v422, %v421
  %v529 = vpack.c.b16 %v424, %v423
  %v530 = vpack.c.b16 %v426, %v425
  %v531 = vpack.c.b16 %v428, %v427
  %v532 = vpack.c.b16 %v430, %v429
  %v533 = vpack.c.b16 %v432, %v431
  %v534 = vpack.c.b16 %v434, %v433
  %v535 = vpack.c.b16 %v436, %v435
  %v536 = vpack.c.b16 %v438, %v437
  %v537 = vpack.c.b16 %v440, %v439
  %v538 = vpack.c.b16 %v442, %v441
  %v539 = vpack.c.b16 %v444, %v443
  %v540 = vpack.c.b16 %v446, %v445
  %v541 = vpack.c.b16 %v448, %v447
  %v542 = vpack.c.b16 %v450, %v449
  %v543 = vpack.c.b16 %v452, %v451
  %v544 = vpack.c.b16 %v454, %v453
  %v545 = vpack.c.b16 %v456, %v455
  %v546 = vpack.c.b16 %v458, %v457
  %v547 = vpack.c.b16 %v460, %v459
  %v548 = vpack.c.b16 %v462, %v461
  %v549 = vpack.c.b16 %v464, %v463
  %v550 = vpack.c.b16 %v466, %v465
  %v551 = vpack.c.b16 %v468, %v467
  %v552 = vpack.c.b16 %v470, %v469
  %v553 = vpack.c.b16 %v472, %v471
  %v554 = vpack.c.b16 %v474, %v473
  %v555 = vpack.c.b16 %v476, %v475
  %v556 = vpack.c.b16 %v478, %v477
  %v557 = vpack.c.b16 %v480, %v479
  %v558 = vpack.c.b16 %v482, %v481
  %v559 = vpack.c.b16 %v484, %v483
  %v560 = vpack.c.b16 %v486, %v485
  %v561 = vpack.c.b16 %v488, %v487
  %v562 = vpack.c.b16 %v490, %v489
  %635 = vmatprep.subr.bf16.mxu0 0
  %636 = vmatpush1.bf16.msra.mxu0 %v491
  %637 = vmatprep.subr.bf16.mxu0 0
  %638 = vmatpush1.bf16.msra.mxu0 %v492
  %639 = vmatprep.subr.bf16.mxu0 0
  %640 = vmatpush1.bf16.msra.mxu0 %v493
  %641 = vmatprep.subr.bf16.mxu0 0
  %642 = vmatpush1.bf16.msra.mxu0 %v494
  %643 = vmatprep.subr.bf16.mxu0 0
  %644 = vmatpush1.bf16.msra.mxu0 %v495
  %645 = vmatprep.subr.bf16.mxu0 0
  %646 = vmatpush1.bf16.msra.mxu0 %v496
  %647 = vmatprep.subr.bf16.mxu0 0
  %648 = vmatpush1.bf16.msra.mxu0 %v497
  %649 = vmatprep.subr.bf16.mxu0 0
  %650 = vmatpush1.bf16.msra.mxu0 %v498
  %651 = vmatprep.subr.bf16.mxu0 0
  %652 = vmatpush1.bf16.msra.mxu0 %v499
  %653 = vmatprep.subr.bf16.mxu0 0
  %654 = vmatpush1.bf16.msra.mxu0 %v500
  %655 = vmatprep.subr.bf16.mxu0 0
  %656 = vmatpush1.bf16.msra.mxu0 %v501
  %657 = vmatprep.subr.bf16.mxu0 0
  %658 = vmatpush1.bf16.msra.mxu0 %v502
  %659 = vmatprep.subr.bf16.mxu0 0
  %660 = vmatpush1.bf16.msra.mxu0 %v503
  %661 = vmatprep.subr.bf16.mxu0 0
  %662 = vmatpush1.bf16.msra.mxu0 %v504
  %663 = vmatprep.subr.bf16.mxu0 0
  %664 = vmatpush1.bf16.msra.mxu0 %v505
  %665 = vmatprep.subr.bf16.mxu0 0
  %666 = vmatpush1.bf16.msra.mxu0 %v506
  %667 = vmatprep.mubr.bf16.mxu0 %v186
  %668 = vmatmul.mubr.bf16.gmra.mrb[0].mxu0 %v185
  %v669 = vpop.f32.mrb[0].mxu0
  %v670 = vadd.f32 %v169, %v669
  %v671 = vpop.f32.mrb[0].mxu0
  %v672 = vpop.f32.mrb[0].mxu0
  %v673 = vpop.f32.mrb[0].mxu0
  %674 = vdwg.mxu0
  %675 = vmatprep.subr.bf16.mxu0 0
  %676 = vmatpush1.bf16.msra.mxu0 %v507
  %677 = vmatprep.subr.bf16.mxu0 0
  %678 = vmatpush1.bf16.msra.mxu0 %v508
  %679 = vmatprep.subr.bf16.mxu0 0
  %680 = vmatpush1.bf16.msra.mxu0 %v509
  %681 = vmatprep.subr.bf16.mxu0 0
  %682 = vmatpush1.bf16.msra.mxu0 %v510
  %683 = vmatprep.subr.bf16.mxu0 0
  %684 = vmatpush1.bf16.msra.mxu0 %v511
  %685 = vmatprep.subr.bf16.mxu0 0
  %686 = vmatpush1.bf16.msra.mxu0 %v512
  %687 = vmatprep.subr.bf16.mxu0 0
  %688 = vmatpush1.bf16.msra.mxu0 %v513
  %689 = vmatprep.subr.bf16.mxu0 0
  %690 = vmatpush1.bf16.msra.mxu0 %v514
  %691 = vmatprep.subr.bf16.mxu0 0
  %692 = vmatpush1.bf16.msra.mxu0 %v515
  %693 = vmatprep.subr.bf16.mxu0 0
  %694 = vmatpush1.bf16.msra.mxu0 %v516
  %695 = vmatprep.subr.bf16.mxu0 0
  %696 = vmatpush1.bf16.msra.mxu0 %v517
  %697 = vmatprep.subr.bf16.mxu0 0
  %698 = vmatpush1.bf16.msra.mxu0 %v518
  %699 = vmatprep.subr.bf16.mxu0 0
  %700 = vmatpush1.bf16.msra.mxu0 %v519
  %701 = vmatprep.subr.bf16.mxu0 0
  %702 = vmatpush1.bf16.msra.mxu0 %v520
  %703 = vmatprep.subr.bf16.mxu0 0
  %704 = vmatpush1.bf16.msra.mxu0 %v521
  %705 = vmatprep.subr.bf16.mxu0 0
  %706 = vmatpush1.bf16.msra.mxu0 %v522
  %707 = vmatprep.mubr.bf16.mxu0 %v188
  %708 = vmatmul.mubr.bf16.gmra.mrb[0].mxu0 %v187
  %v709 = vpop.f32.mrb[0].mxu0
  %v710 = vadd.f32 %v670, %v709
  %v711 = vpop.f32.mrb[0].mxu0
  %v712 = vpop.f32.mrb[0].mxu0
  %v713 = vpop.f32.mrb[0].mxu0
  %714 = vdwg.mxu0
  %715 = vmatprep.subr.bf16.mxu0 0
  %716 = vmatpush1.bf16.msra.mxu0 %v523
  %717 = vmatprep.subr.bf16.mxu0 0
  %718 = vmatpush1.bf16.msra.mxu0 %v524
  %719 = vmatprep.subr.bf16.mxu0 0
  %720 = vmatpush1.bf16.msra.mxu0 %v525
  %721 = vmatprep.subr.bf16.mxu0 0
  %722 = vmatpush1.bf16.msra.mxu0 %v526
  %723 = vmatprep.subr.bf16.mxu0 0
  %724 = vmatpush1.bf16.msra.mxu0 %v527
  %725 = vmatprep.subr.bf16.mxu0 0
  %726 = vmatpush1.bf16.msra.mxu0 %v528
  %727 = vmatprep.subr.bf16.mxu0 0
  %728 = vmatpush1.bf16.msra.mxu0 %v529
  %729 = vmatprep.subr.bf16.mxu0 0
  %730 = vmatpush1.bf16.msra.mxu0 %v530
  %731 = vmatprep.subr.bf16.mxu0 0
  %732 = vmatpush1.bf16.msra.mxu0 %v531
  %733 = vmatprep.subr.bf16.mxu0 0
  %734 = vmatpush1.bf16.msra.mxu0 %v532
  %735 = vmatprep.subr.bf16.mxu0 0
  %736 = vmatpush1.bf16.msra.mxu0 %v533
  %737 = vmatprep.subr.bf16.mxu0 0
  %738 = vmatpush1.bf16.msra.mxu0 %v534
  %739 = vmatprep.subr.bf16.mxu0 0
  %740 = vmatpush1.bf16.msra.mxu0 %v535
  %741 = vmatprep.subr.bf16.mxu0 0
  %742 = vmatpush1.bf16.msra.mxu0 %v536
  %743 = vmatprep.subr.bf16.mxu0 0
  %744 = vmatpush1.bf16.msra.mxu0 %v537
  %745 = vmatprep.subr.bf16.mxu0 0
  %746 = vmatpush1.bf16.msra.mxu0 %v538
  %747 = vmatprep.mubr.bf16.mxu0 %v190
  %748 = vmatmul.mubr.bf16.gmra.mrb[0].mxu0 %v189
  %v749 = vpop.f32.mrb[0].mxu0
  %v750 = vadd.f32 %v710, %v749
  %v751 = vpop.f32.mrb[0].mxu0
  %v752 = vpop.f32.mrb[0].mxu0
  %v753 = vpop.f32.mrb[0].mxu0
  %754 = vdwg.mxu0
  %755 = vmatprep.subr.bf16.mxu0 0
  %756 = vmatpush1.bf16.msra.mxu0 %v539
  %757 = vmatprep.subr.bf16.mxu0 0
  %758 = vmatpush1.bf16.msra.mxu0 %v540
  %759 = vmatprep.subr.bf16.mxu0 0
  %760 = vmatpush1.bf16.msra.mxu0 %v541
  %761 = vmatprep.subr.bf16.mxu0 0
  %762 = vmatpush1.bf16.msra.mxu0 %v542
  %763 = vmatprep.subr.bf16.mxu0 0
  %764 = vmatpush1.bf16.msra.mxu0 %v543
  %765 = vmatprep.subr.bf16.mxu0 0
  %766 = vmatpush1.bf16.msra.mxu0 %v544
  %767 = vmatprep.subr.bf16.mxu0 0
  %768 = vmatpush1.bf16.msra.mxu0 %v545
  %769 = vmatprep.subr.bf16.mxu0 0
  %770 = vmatpush1.bf16.msra.mxu0 %v546
  %771 = vmatprep.subr.bf16.mxu0 0
  %772 = vmatpush1.bf16.msra.mxu0 %v547
  %773 = vmatprep.subr.bf16.mxu0 0
  %774 = vmatpush1.bf16.msra.mxu0 %v548
  %775 = vmatprep.subr.bf16.mxu0 0
  %776 = vmatpush1.bf16.msra.mxu0 %v549
  %777 = vmatprep.subr.bf16.mxu0 0
  %778 = vmatpush1.bf16.msra.mxu0 %v550
  %779 = vmatprep.subr.bf16.mxu0 0
  %780 = vmatpush1.bf16.msra.mxu0 %v551
  %781 = vmatprep.subr.bf16.mxu0 0
  %782 = vmatpush1.bf16.msra.mxu0 %v552
  %783 = vmatprep.subr.bf16.mxu0 0
  %784 = vmatpush1.bf16.msra.mxu0 %v553
  %785 = vmatprep.subr.bf16.mxu0 0
  %786 = vmatpush1.bf16.msra.mxu0 %v554
  %787 = vmatprep.mubr.bf16.mxu0 %v192
  %788 = vmatmul.mubr.bf16.gmra.mrb[0].mxu0 %v191
  %v789 = vpop.f32.mrb[0].mxu0
  %v790 = vadd.f32 %v750, %v789
  %v791 = vpop.f32.mrb[0].mxu0
  %v792 = vpop.f32.mrb[0].mxu0
  %v793 = vpop.f32.mrb[0].mxu0
  %794 = vdwg.mxu0
  %795 = vmatprep.subr.bf16.mxu0 0
  %796 = vmatpush1.bf16.msra.mxu0 %v555
  %797 = vmatprep.subr.bf16.mxu0 0
  %798 = vmatpush1.bf16.msra.mxu0 %v556
  %799 = vmatprep.subr.bf16.mxu0 0
  %800 = vmatpush1.bf16.msra.mxu0 %v557
  %801 = vmatprep.subr.bf16.mxu0 0
  %802 = vmatpush1.bf16.msra.mxu0 %v558
  %803 = vmatprep.subr.bf16.mxu0 0
  %804 = vmatpush1.bf16.msra.mxu0 %v559
  %805 = vmatprep.subr.bf16.mxu0 0
  %806 = vmatpush1.bf16.msra.mxu0 %v560
  %807 = vmatprep.subr.bf16.mxu0 0
  %808 = vmatpush1.bf16.msra.mxu0 %v561
  %809 = vmatprep.subr.bf16.mxu0 0
  %810 = vmatpush1.bf16.msra.mxu0 %v562
  %811 = vmatprep.subr.bf16.mxu0 0
  %812 = vmatpush1.bf16.msra.mxu0 0
  %813 = vmatprep.subr.bf16.mxu0 0
  %814 = vmatpush1.bf16.msra.mxu0 0
  %815 = vmatprep.subr.bf16.mxu0 0
  %816 = vmatpush1.bf16.msra.mxu0 0
  %817 = vmatprep.subr.bf16.mxu0 0
  %818 = vmatpush1.bf16.msra.mxu0 0
  %819 = vmatprep.subr.bf16.mxu0 0
  %820 = vmatpush1.bf16.msra.mxu0 0
  %821 = vmatprep.subr.bf16.mxu0 0
  %822 = vmatpush1.bf16.msra.mxu0 0
  %823 = vmatprep.subr.bf16.mxu0 0
  %824 = vmatpush1.bf16.msra.mxu0 0
  %825 = vmatprep.subr.bf16.mxu0 0
  %826 = vmatpush1.bf16.msra.mxu0 0
  %827 = vmatprep.mubr.bf16.mxu0 0
  %828 = vmatmul.mubr.bf16.gmra.mrb[0].mxu0 %v193
  %v829 = vpop.f32.mrb[0].mxu0
  %v830 = vadd.f32 %v790, %v829
  %v831 = vpop.f32.mrb[0].mxu0
  %v832 = vpop.f32.mrb[0].mxu0
  %v833 = vpop.f32.mrb[0].mxu0
  %834 = vdwg.mxu0
  %v835 = vmax.f32 %v830, 0.0
  %v836 = vpack.c.bf16 %v835, %v835
  %837 = vst [vmem:[%s3] sm:$0xf] %v836
  // Predicated region
  $region14: #{fast_scnn_forward.9} parent=0 // pred_check
    _
  $region15: #{fast_scnn_forward.9} parent=0 // pred_check_branch
    %839 = sbr.rel (0) target = $region17
  $region16: #{fast_scnn_forward.9} parent=0 // pred_region
    _
  $region17: #{fast_scnn_forward.9} parent=0 // pred_fallthru
    _
  // Predicated region
  $region18: #{fast_scnn_forward.9} parent=0 // pred_check
    _
  $region19: #{fast_scnn_forward.9} parent=0 // pred_check_branch
    %841 = sbr.rel (0) target = $region21
  $region20: #{fast_scnn_forward.9} parent=0 // pred_region
    _
  $region21: #{fast_scnn_forward.9} parent=0 // pred_fallthru
    _

</llo_original>
